<compile_context>
chip_gen: v7x
topology: tpu7x:2x2x1
jax: 0.10.0
libtpu: 0.0.40
codegen_flags: <defaults>
</compile_context>

<pallas_src>
import functools
import numpy as np
import jax
import jax.numpy as jnp
from jax.experimental import pallas as pl
from jax.experimental.pallas import tpu as pltpu

# MXU inputs in bf16 (f32 accumulation); elementwise / softmax math stays f32 (v5e-safe).
MATMUL_DTYPE = jnp.bfloat16
TILE_M = 256   # row tile; tiny working set -> fits v7x's 64 MiB VMEM comfortably double-buffered.


# --------------------------------------------------------------------------------------
# helpers
# --------------------------------------------------------------------------------------
def _round_up(x, m):
    return ((x + m - 1) // m) * m


def _cdiv(a, b):
    return -(-a // b)


def _pick_tile(m, max_tile=TILE_M):
    """Row tile: multiple of 8, <= max_tile, and >= 2 tiles whenever possible (v7x has 2 TCs)."""
    if m <= 8:
        return 8
    n_tiles = max(2, _cdiv(m, max_tile))
    return min(max_tile, _round_up(_cdiv(m, n_tiles), 8))


def _mm(a, w_ref):
    """MXU matmul: cast activations to the weight dtype (bf16), accumulate in f32."""
    w = w_ref[...]
    return jnp.dot(a.astype(w.dtype), w, preferred_element_type=jnp.float32)


def _group_reduce(x, dm, k, op):
    """Reduce over the k neighbour groups (each dm lanes wide) with circular lane rolls (XLU slot).
    Tree reduction (log2(k) rolls) when k is a power of two, linear otherwise."""
    if k == 1:
        return x
    if k & (k - 1) == 0:
        r = x
        shift = dm
        while shift < k * dm:
            r = op(r, pltpu.roll(r, shift, axis=1))
            shift *= 2
        return r
    r = x
    for j in range(1, k):
        r = op(r, pltpu.roll(x, j * dm, axis=1))
    return r


# --------------------------------------------------------------------------------------
# Kernel A: fused (fc1 . [W_k | W_v]) projection -> bf16 k / v slabs
# --------------------------------------------------------------------------------------
def _kv_proj_kernel(x_ref, wkv_ref, bkv_ref, k_ref, v_ref):
    dm = k_ref.shape[1]
    h = _mm(x_ref[...], wkv_ref) + bkv_ref[...]          # [tile, 2*dm] f32
    k_ref[...] = h[:, :dm].astype(k_ref.dtype)
    v_ref[...] = h[:, dm:].astype(v_ref.dtype)


def pallas_kv_proj(feats2, wkv, bkv, tile_m=TILE_M):
    M, dp = feats2.shape
    dm = wkv.shape[1] // 2
    tile = _pick_tile(M, tile_m)
    grid = (pl.cdiv(M, tile),)
    return pl.pallas_call(
        _kv_proj_kernel,
        out_shape=(jax.ShapeDtypeStruct((M, dm), MATMUL_DTYPE),
                   jax.ShapeDtypeStruct((M, dm), MATMUL_DTYPE)),
        grid=grid,
        in_specs=[pl.BlockSpec((tile, dp), lambda i: (i, 0)),
                  pl.BlockSpec(wkv.shape, lambda i: (0, 0)),
                  pl.BlockSpec(bkv.shape, lambda i: (0, 0))],
        out_specs=(pl.BlockSpec((tile, dm), lambda i: (i, 0)),
                   pl.BlockSpec((tile, dm), lambda i: (i, 0))),
        compiler_params=pltpu.CompilerParams(dimension_semantics=("parallel",)),
    )(feats2, wkv, bkv)


# --------------------------------------------------------------------------------------
# Kernel B: fused attention tail
#   q projection (from `pre`) -> fc_delta -> (q - k + pos) -> fc_gamma (scale pre-folded) ->
#   per-channel softmax over the k neighbours -> weighted sum + fc2 (folded into one GEMM) ->
#   residual add; also emits the attention weights.
# --------------------------------------------------------------------------------------
def _attn_tail_kernel(kg_ref, vg_ref, rel_ref, pre_ref,
                      wqr_ref, bqr_ref,
                      d1_ref, d1b_ref, d2_ref, d2b_ref,
                      g1_ref, g1b_ref, g2_ref, g2b_ref,
                      fc2_ref, fc2b_ref,
                      res_ref, attn_ref, *, k, dm):
    # fc_delta (block-diagonal kron(I_k, W) weights -> one lane-dense GEMM per layer)
    pos = jnp.maximum(_mm(rel_ref[...], d1_ref) + d1b_ref[...], 0.0)
    pos = _mm(pos, d2_ref) + d2b_ref[...]                               # [T, k*dm] f32

    pre = pre_ref[...]                                                  # [T, dp] f32 (residual)
    # q replicated over the k groups straight from the MXU (fc1 + W_q folded, column-tiled weight)
    qrep = _mm(pre, wqr_ref) + bqr_ref[...]                             # [T, k*dm]
    h = qrep - kg_ref[...].astype(jnp.float32) + pos

    # fc_gamma (1/sqrt(d_model) folded into g2/g2b at setup)
    g = jnp.maximum(_mm(h, g1_ref) + g1b_ref[...], 0.0)
    g = _mm(g, g2_ref) + g2b_ref[...]                                   # [T, k*dm]

    # per-channel softmax over the k neighbour groups (tree of circular rolls -> XLU slot)
    m = _group_reduce(g, dm, k, jnp.maximum)
    e = jnp.exp(g - m)
    s = _group_reduce(e, dm, k, jnp.add)
    attn = e / s                                                        # exact normalisation

    wv = attn * (vg_ref[...].astype(jnp.float32) + pos)
    # neighbour-sum + fc2 folded into a single lane-dense GEMM (fc2 weight row-tiled k times)
    res_ref[...] = _mm(wv, fc2_ref) + fc2b_ref[...] + pre
    attn_ref[...] = attn


def pallas_attn_tail(kg, vg, rel2, pre2, prep, *, k, dm, dp, tile_m=TILE_M):
    M = kg.shape[0]
    kd = k * dm
    tile = _pick_tile(M, tile_m)
    grid = (pl.cdiv(M, tile),)

    consts = [prep["wq_rep"], prep["bq_rep"],
              prep["d1"], prep["d1b"], prep["d2"], prep["d2b"],
              prep["g1"], prep["g1b"], prep["g2"], prep["g2b"],
              prep["fc2"], prep["fc2b"]]

    kernel = functools.partial(_attn_tail_kernel, k=k, dm=dm)

    res, attn = pl.pallas_call(
        kernel,
        out_shape=(jax.ShapeDtypeStruct((M, dp), jnp.float32),
                   jax.ShapeDtypeStruct((M, kd), jnp.float32)),
        grid=grid,
        in_specs=[pl.BlockSpec((tile, kd), lambda i: (i, 0)),
                  pl.BlockSpec((tile, kd), lambda i: (i, 0)),
                  pl.BlockSpec((tile, 2 * k), lambda i: (i, 0)),
                  pl.BlockSpec((tile, dp), lambda i: (i, 0))]
                 + [pl.BlockSpec(a.shape, lambda i: (0, 0)) for a in consts],
        out_specs=(pl.BlockSpec((tile, dp), lambda i: (i, 0)),
                   pl.BlockSpec((tile, kd), lambda i: (i, 0))),
        compiler_params=pltpu.CompilerParams(dimension_semantics=("parallel",)),
    )(kg, vg, rel2, pre2, *consts)
    return res, attn


# --------------------------------------------------------------------------------------
# One-time weight preprocessing (hoisted out of the forward)
# --------------------------------------------------------------------------------------
def prepare_block_params(p, k):
    """fc1 folded into q/k/v projections, block-diagonal kron(I_k, W) per-neighbour MLP weights,
    k-times row-tiled fc2, 1/sqrt(d_model) folded into fc_gamma's last layer, bf16 casts."""
    dp, dm = p["fc1_w"].shape
    kd = k * dm
    eye = jnp.eye(k, dtype=jnp.float32)

    def blockdiag(w):
        return jnp.kron(eye, w.astype(jnp.float32)).astype(MATMUL_DTYPE)

    def tiled_bias(b):
        return jnp.tile(b.astype(jnp.float32), k).reshape(1, kd)

    w1, b1 = p["fc1_w"], p["fc1_b"]
    wq_eff, bq_eff = w1 @ p["wq_w"], b1 @ p["wq_w"]     # exact collapse (no nonlinearity after fc1)
    wk_eff, bk_eff = w1 @ p["wk_w"], b1 @ p["wk_w"]
    wv_eff, bv_eff = w1 @ p["wv_w"], b1 @ p["wv_w"]
    scale = 1.0 / float(np.sqrt(dm))

    return {
        "wkv": jnp.concatenate([wk_eff, wv_eff], axis=1).astype(MATMUL_DTYPE),           # [dp, 2*dm]
        "bkv": jnp.concatenate([bk_eff, bv_eff]).reshape(1, 2 * dm).astype(jnp.float32),
        "wq_rep": jnp.tile(wq_eff, (1, k)).astype(MATMUL_DTYPE),                         # [dp, k*dm]
        "bq_rep": jnp.tile(bq_eff, k).reshape(1, kd).astype(jnp.float32),
        "d1": blockdiag(p["d1_w"]), "d1b": tiled_bias(p["d1_b"]),
        "d2": blockdiag(p["d2_w"]), "d2b": tiled_bias(p["d2_b"]),
        "g1": blockdiag(p["g1_w"]), "g1b": tiled_bias(p["g1_b"]),
        "g2": blockdiag(p["g2_w"] * scale), "g2b": tiled_bias(p["g2_b"] * scale),
        "fc2": jnp.tile(p["fc2_w"].astype(jnp.float32), (k, 1)).astype(MATMUL_DTYPE),    # [k*dm, dp]
        "fc2b": p["fc2_b"].reshape(1, dp).astype(jnp.float32),
    }


# --------------------------------------------------------------------------------------
# Plain-JAX glue (kNN / gathers — no clean Pallas equivalent)
# --------------------------------------------------------------------------------------
def square_distance(src, dst):
    return jnp.sum((src[:, :, None, :] - dst[:, None, :, :]) ** 2, axis=-1)


def knn_indices(xy, k):
    # top_k on negated distances instead of a full argsort (same result, ties are a measure-zero event)
    _, idx = jax.lax.top_k(-square_distance(xy, xy), k)
    return idx                                                          # [B, N, k]


def index_points(points, idx):
    B = points.shape[0]
    C = points.shape[-1]
    raw = idx.shape
    idx_flat = idx.reshape(B, -1)
    gathered = jnp.take_along_axis(
        points, jnp.broadcast_to(idx_flat[:, :, None], (B, idx_flat.shape[1], C)), axis=1)
    return gathered.reshape(*raw, C)


# --------------------------------------------------------------------------------------
# TransformerBlock forward
# --------------------------------------------------------------------------------------
def transformer_block_forward(prep, xy, features, *, k, d_model):
    B, N, dp = features.shape
    M = B * N
    dm = d_model

    knn_idx = knn_indices(xy, k)                                        # [B,N,k]
    knn_xy = index_points(xy, knn_idx)                                  # [B,N,k,2]
    rel = xy[:, :, None, :] - knn_xy                                    # [B,N,k,2]

    feats2 = features.reshape(M, dp).astype(jnp.float32)

    # Kernel A: fused fc1.[Wk|Wv] projection -> bf16 k / v slabs (q is recomputed inside Kernel B)
    kf, vf = pallas_kv_proj(feats2, prep["wkv"], prep["bkv"])
    ks = kf.reshape(B, N, dm)
    vs = vf.reshape(B, N, dm)

    # TODO(synk): fuse this neighbour gather into Kernel B (VMEM-resident per-batch k/v slabs +
    # scalar-prefetched knn_idx) once an efficient in-kernel gather path is available; kept in
    # plain JAX (on bf16 slabs) for now.
    kg = index_points(ks, knn_idx).reshape(M, k * dm)                   # bf16 [M, k*dm]
    vg = index_points(vs, knn_idx).reshape(M, k * dm)                   # bf16 [M, k*dm]
    rel2 = rel.reshape(M, k * 2)

    res2, attn2 = pallas_attn_tail(kg, vg, rel2, feats2, prep, k=k, dm=dm, dp=dp)
    return res2.reshape(B, N, dp), attn2.reshape(B, N, k, dm)


def transformer_block_reference(p, xy, features, k, d_model):
    """Pure-JAX f32 reference (mirrors the PyTorch forward) for a numerical sanity check."""
    knn_idx = knn_indices(xy, k)          # same neighbour selection as the Pallas path
    knn_xy = index_points(xy, knn_idx)
    pre = features
    x = features @ p["fc1_w"] + p["fc1_b"]
    q = x @ p["wq_w"]
    kf = index_points(x @ p["wk_w"], knn_idx)
    vf = index_points(x @ p["wv_w"], knn_idx)
    rel = xy[:, :, None, :] - knn_xy
    pos = jnp.maximum(rel @ p["d1_w"] + p["d1_b"], 0.0) @ p["d2_w"] + p["d2_b"]
    g = jnp.maximum((q[:, :, None, :] - kf + pos) @ p["g1_w"] + p["g1_b"], 0.0) @ p["g2_w"] + p["g2_b"]
    attn = jax.nn.softmax(g / np.sqrt(d_model), axis=-2)
    res = jnp.einsum('bmnf,bmnf->bmf', attn, vf + pos) @ p["fc2_w"] + p["fc2_b"] + pre
    return res, attn


# --------------------------------------------------------------------------------------
# Deterministic parameter init (PyTorch nn.Linear default uniform bounds), weights as [in, out]
# --------------------------------------------------------------------------------------
class KeyGen:
    def __init__(self, seed):
        self.key = jax.random.PRNGKey(seed)

    def __call__(self):
        self.key, sub = jax.random.split(self.key)
        return sub


def linear_init(kg, fan_in, fan_out, bias=True):
    bound = 1.0 / float(np.sqrt(fan_in))
    w = jax.random.uniform(kg(), (fan_in, fan_out), jnp.float32, -bound, bound)
    b = jax.random.uniform(kg(), (fan_out,), jnp.float32, -bound, bound) if bias else None
    return w, b


def init_transformer_block(kg, d_points, d_model):
    p = {}
    p["fc1_w"], p["fc1_b"] = linear_init(kg, d_points, d_model)
    p["fc2_w"], p["fc2_b"] = linear_init(kg, d_model, d_points)
    p["d1_w"], p["d1_b"] = linear_init(kg, 2, d_model)
    p["d2_w"], p["d2_b"] = linear_init(kg, d_model, d_model)
    p["g1_w"], p["g1_b"] = linear_init(kg, d_model, d_model)
    p["g2_w"], p["g2_b"] = linear_init(kg, d_model, d_model)
    p["wq_w"], _ = linear_init(kg, d_model, d_model, bias=False)
    p["wk_w"], _ = linear_init(kg, d_model, d_model, bias=False)
    p["wv_w"], _ = linear_init(kg, d_model, d_model, bias=False)
    return p


# --------------------------------------------------------------------------------------
if __name__ == "__main__":
    B, N = 2, 16
    D_POINTS, D_MODEL, K = 32, 32, 4

    params = init_transformer_block(KeyGen(42), D_POINTS, D_MODEL)
    prep = prepare_block_params(params, K)         # one-time weight preprocessing (not per call)

    key = jax.random.PRNGKey(0)
    k1, k2 = jax.random.split(key)
    xy = jax.random.uniform(k1, (B, N, 2), jnp.float32, -1.0, 1.0)
    features = jax.random.uniform(k2, (B, N, D_POINTS), jnp.float32, -1.0, 1.0)

    fwd = jax.jit(functools.partial(transformer_block_forward, k=K, d_model=D_MODEL))
    res, attn = jax.block_until_ready(fwd(prep, xy, features))

    assert res.shape == (B, N, D_POINTS) and res.dtype == jnp.float32
    assert attn.shape == (B, N, K, D_MODEL) and attn.dtype == jnp.float32
    assert bool(jnp.all(jnp.isfinite(res))) and bool(jnp.all(jnp.isfinite(attn)))
    # softmax sanity: attention weights over the k neighbours sum to ~1 per (point, channel)
    assert bool(jnp.all(jnp.abs(jnp.sum(attn, axis=2) - 1.0) < 1e-2))

    # numerical check vs pure-JAX f32 reference (loose tolerance: bf16 MXU inputs / bf16 intermediates)
    res_ref, attn_ref = transformer_block_reference(params, xy, features, K, D_MODEL)
    assert bool(jnp.all(jnp.abs(res - res_ref) < 0.1))
    assert bool(jnp.all(jnp.abs(attn - attn_ref) < 0.05))

    print("KERNEL_OK")
</pallas_src>

<mosaic_0001>
module attributes {stable_mosaic.version = 11 : i64} {
  func.func @_kv_proj_kernel(%arg0: i32, %arg1: memref<16x32xf32, #tpu.memory_space<vmem>>, %arg2: memref<32x64xbf16, #tpu.memory_space<vmem>>, %arg3: memref<1x64xf32, #tpu.memory_space<vmem>>, %arg4: memref<16x32xbf16, #tpu.memory_space<vmem>>, %arg5: memref<16x32xbf16, #tpu.memory_space<vmem>>) attributes {dimension_semantics = [#tpu.dimension_semantics<parallel>], iteration_bounds = array<i64: 2>, scalar_prefetch = 0 : i64, scratch_operands = 0 : i64, tpu.core_type = #tpu.core_type<tc>, window_params = [{transform_indices = @transform_0, window_bounds = array<i64: 16, 32>}, {pipeline_mode = #tpu.pipeline_mode<synchronous>, transform_indices = @transform_1, window_bounds = array<i64: 32, 64>}, {pipeline_mode = #tpu.pipeline_mode<synchronous>, transform_indices = @transform_2, window_bounds = array<i64: 1, 64>}, {transform_indices = @transform_3, window_bounds = array<i64: 16, 32>}, {transform_indices = @transform_4, window_bounds = array<i64: 16, 32>}]} {
    %c0 = arith.constant 0 : index
    %c0_0 = arith.constant 0 : index
    %0 = vector.load %arg1[%c0, %c0_0] : memref<16x32xf32, #tpu.memory_space<vmem>>, vector<16x32xf32>
    %c0_1 = arith.constant 0 : index
    %c0_2 = arith.constant 0 : index
    %1 = vector.load %arg2[%c0_1, %c0_2] : memref<32x64xbf16, #tpu.memory_space<vmem>>, vector<32x64xbf16>
    %2 = arith.truncf %0 : vector<16x32xf32> to vector<16x32xbf16>
    %cst = arith.constant dense<0.000000e+00> : vector<16x64xf32>
    %3 = tpu.matmul %2, %1, %cst {dimension_numbers = #tpu.dot_dimension_numbers<[1], [0], [0], [1], [0, 0, 1, 1], [], []>} : vector<16x32xbf16>, vector<32x64xbf16>, vector<16x64xf32> -> vector<16x64xf32>
    %c0_3 = arith.constant 0 : index
    %c0_4 = arith.constant 0 : index
    %4 = vector.load %arg3[%c0_3, %c0_4] : memref<1x64xf32, #tpu.memory_space<vmem>>, vector<1x64xf32>
    %5 = vector.broadcast %4 : vector<1x64xf32> to vector<16x64xf32>
    %6 = arith.addf %3, %5 : vector<16x64xf32>
    %7 = vector.extract_strided_slice %6 {offsets = [0, 0], sizes = [16, 32], strides = [1, 1]} : vector<16x64xf32> to vector<16x32xf32>
    %8 = arith.truncf %7 : vector<16x32xf32> to vector<16x32xbf16>
    %c0_5 = arith.constant 0 : index
    %c0_6 = arith.constant 0 : index
    %9 = vector.load %arg4[%c0_5, %c0_6] : memref<16x32xbf16, #tpu.memory_space<vmem>>, vector<16x32xbf16>
    tpu.vector_store %arg4[%c0_5, %c0_6], %8 {strides = array<i32>} : memref<16x32xbf16, #tpu.memory_space<vmem>>, vector<16x32xbf16>,
    %10 = vector.extract_strided_slice %6 {offsets = [0, 32], sizes = [16, 32], strides = [1, 1]} : vector<16x64xf32> to vector<16x32xf32>
    %11 = arith.truncf %10 : vector<16x32xf32> to vector<16x32xbf16>
    %c0_7 = arith.constant 0 : index
    %c0_8 = arith.constant 0 : index
    %12 = vector.load %arg5[%c0_7, %c0_8] : memref<16x32xbf16, #tpu.memory_space<vmem>>, vector<16x32xbf16>
    tpu.vector_store %arg5[%c0_7, %c0_8], %11 {strides = array<i32>} : memref<16x32xbf16, #tpu.memory_space<vmem>>, vector<16x32xbf16>,
    return
  }
  func.func @transform_0(%arg0: i32) -> (i32, i32) {
    %c0_i32 = arith.constant 0 : i32
    %c0_i32_0 = arith.constant 0 : i32
    return %arg0, %c0_i32 : i32, i32
  }
  func.func @transform_1(%arg0: i32) -> (i32, i32) {
    %c0_i32 = arith.constant 0 : i32
    %c0_i32_0 = arith.constant 0 : i32
    %c0_i32_1 = arith.constant 0 : i32
    return %c0_i32, %c0_i32_0 : i32, i32
  }
  func.func @transform_2(%arg0: i32) -> (i32, i32) {
    %c0_i32 = arith.constant 0 : i32
    %c0_i32_0 = arith.constant 0 : i32
    %c0_i32_1 = arith.constant 0 : i32
    return %c0_i32, %c0_i32_0 : i32, i32
  }
  func.func @transform_3(%arg0: i32) -> (i32, i32) {
    %c0_i32 = arith.constant 0 : i32
    %c0_i32_0 = arith.constant 0 : i32
    return %arg0, %c0_i32 : i32, i32
  }
  func.func @transform_4(%arg0: i32) -> (i32, i32) {
    %c0_i32 = arith.constant 0 : i32
    %c0_i32_0 = arith.constant 0 : i32
    return %arg0, %c0_i32 : i32, i32
  }
}

module attributes {stable_mosaic.version = 11 : i64} {
  func.func @_attn_tail_kernel(%arg0: i32, %arg1: memref<16x128xbf16, #tpu.memory_space<vmem>>, %arg2: memref<16x128xbf16, #tpu.memory_space<vmem>>, %arg3: memref<16x8xf32, #tpu.memory_space<vmem>>, %arg4: memref<16x32xf32, #tpu.memory_space<vmem>>, %arg5: memref<32x128xbf16, #tpu.memory_space<vmem>>, %arg6: memref<1x128xf32, #tpu.memory_space<vmem>>, %arg7: memref<8x128xbf16, #tpu.memory_space<vmem>>, %arg8: memref<1x128xf32, #tpu.memory_space<vmem>>, %arg9: memref<128x128xbf16, #tpu.memory_space<vmem>>, %arg10: memref<1x128xf32, #tpu.memory_space<vmem>>, %arg11: memref<128x128xbf16, #tpu.memory_space<vmem>>, %arg12: memref<1x128xf32, #tpu.memory_space<vmem>>, %arg13: memref<128x128xbf16, #tpu.memory_space<vmem>>, %arg14: memref<1x128xf32, #tpu.memory_space<vmem>>, %arg15: memref<128x32xbf16, #tpu.memory_space<vmem>>, %arg16: memref<1x32xf32, #tpu.memory_space<vmem>>, %arg17: memref<16x32xf32, #tpu.memory_space<vmem>>, %arg18: memref<16x128xf32, #tpu.memory_space<vmem>>) attributes {dimension_semantics = [#tpu.dimension_semantics<parallel>], iteration_bounds = array<i64: 2>, scalar_prefetch = 0 : i64, scratch_operands = 0 : i64, tpu.core_type = #tpu.core_type<tc>, window_params = [{transform_indices = @transform_0, window_bounds = array<i64: 16, 128>}, {transform_indices = @transform_1, window_bounds = array<i64: 16, 128>}, {transform_indices = @transform_2, window_bounds = array<i64: 16, 8>}, {transform_indices = @transform_3, window_bounds = array<i64: 16, 32>}, {pipeline_mode = #tpu.pipeline_mode<synchronous>, transform_indices = @transform_4, window_bounds = array<i64: 32, 128>}, {pipeline_mode = #tpu.pipeline_mode<synchronous>, transform_indices = @transform_5, window_bounds = array<i64: 1, 128>}, {pipeline_mode = #tpu.pipeline_mode<synchronous>, transform_indices = @transform_6, window_bounds = array<i64: 8, 128>}, {pipeline_mode = #tpu.pipeline_mode<synchronous>, transform_indices = @transform_7, window_bounds = array<i64: 1, 128>}, {pipeline_mode = #tpu.pipeline_mode<synchronous>, transform_indices = @transform_8, window_bounds = array<i64: 128, 128>}, {pipeline_mode = #tpu.pipeline_mode<synchronous>, transform_indices = @transform_9, window_bounds = array<i64: 1, 128>}, {pipeline_mode = #tpu.pipeline_mode<synchronous>, transform_indices = @transform_10, window_bounds = array<i64: 128, 128>}, {pipeline_mode = #tpu.pipeline_mode<synchronous>, transform_indices = @transform_11, window_bounds = array<i64: 1, 128>}, {pipeline_mode = #tpu.pipeline_mode<synchronous>, transform_indices = @transform_12, window_bounds = array<i64: 128, 128>}, {pipeline_mode = #tpu.pipeline_mode<synchronous>, transform_indices = @transform_13, window_bounds = array<i64: 1, 128>}, {pipeline_mode = #tpu.pipeline_mode<synchronous>, transform_indices = @transform_14, window_bounds = array<i64: 128, 32>}, {pipeline_mode = #tpu.pipeline_mode<synchronous>, transform_indices = @transform_15, window_bounds = array<i64: 1, 32>}, {transform_indices = @transform_16, window_bounds = array<i64: 16, 32>}, {transform_indices = @transform_17, window_bounds = array<i64: 16, 128>}]} {
    %c0 = arith.constant 0 : index
    %c0_0 = arith.constant 0 : index
    %0 = vector.load %arg3[%c0, %c0_0] : memref<16x8xf32, #tpu.memory_space<vmem>>, vector<16x8xf32>
    %c0_1 = arith.constant 0 : index
    %c0_2 = arith.constant 0 : index
    %1 = vector.load %arg7[%c0_1, %c0_2] : memref<8x128xbf16, #tpu.memory_space<vmem>>, vector<8x128xbf16>
    %2 = arith.truncf %0 : vector<16x8xf32> to vector<16x8xbf16>
    %cst = arith.constant dense<0.000000e+00> : vector<16x128xf32>
    %3 = tpu.matmul %2, %1, %cst {dimension_numbers = #tpu.dot_dimension_numbers<[1], [0], [0], [1], [0, 0, 1, 1], [], []>} : vector<16x8xbf16>, vector<8x128xbf16>, vector<16x128xf32> -> vector<16x128xf32>
    %c0_3 = arith.constant 0 : index
    %c0_4 = arith.constant 0 : index
    %4 = vector.load %arg8[%c0_3, %c0_4] : memref<1x128xf32, #tpu.memory_space<vmem>>, vector<1x128xf32>
    %5 = vector.broadcast %4 : vector<1x128xf32> to vector<16x128xf32>
    %6 = arith.addf %3, %5 : vector<16x128xf32>
    %cst_5 = arith.constant 0.000000e+00 : f32
    %7 = vector.broadcast %cst_5 : f32 to vector<16x128xf32>
    %8 = arith.maximumf %6, %7 : vector<16x128xf32>
    %c0_6 = arith.constant 0 : index
    %c0_7 = arith.constant 0 : index
    %9 = vector.load %arg9[%c0_6, %c0_7] : memref<128x128xbf16, #tpu.memory_space<vmem>>, vector<128x128xbf16>
    %10 = arith.truncf %8 : vector<16x128xf32> to vector<16x128xbf16>
    %cst_8 = arith.constant dense<0.000000e+00> : vector<16x128xf32>
    %11 = tpu.matmul %10, %9, %cst_8 {dimension_numbers = #tpu.dot_dimension_numbers<[1], [0], [0], [1], [0, 0, 1, 1], [], []>} : vector<16x128xbf16>, vector<128x128xbf16>, vector<16x128xf32> -> vector<16x128xf32>
    %c0_9 = arith.constant 0 : index
    %c0_10 = arith.constant 0 : index
    %12 = vector.load %arg10[%c0_9, %c0_10] : memref<1x128xf32, #tpu.memory_space<vmem>>, vector<1x128xf32>
    %13 = vector.broadcast %12 : vector<1x128xf32> to vector<16x128xf32>
    %14 = arith.addf %11, %13 : vector<16x128xf32>
    %c0_11 = arith.constant 0 : index
    %c0_12 = arith.constant 0 : index
    %15 = vector.load %arg4[%c0_11, %c0_12] : memref<16x32xf32, #tpu.memory_space<vmem>>, vector<16x32xf32>
    %c0_13 = arith.constant 0 : index
    %c0_14 = arith.constant 0 : index
    %16 = vector.load %arg5[%c0_13, %c0_14] : memref<32x128xbf16, #tpu.memory_space<vmem>>, vector<32x128xbf16>
    %17 = arith.truncf %15 : vector<16x32xf32> to vector<16x32xbf16>
    %cst_15 = arith.constant dense<0.000000e+00> : vector<16x128xf32>
    %18 = tpu.matmul %17, %16, %cst_15 {dimension_numbers = #tpu.dot_dimension_numbers<[1], [0], [0], [1], [0, 0, 1, 1], [], []>} : vector<16x32xbf16>, vector<32x128xbf16>, vector<16x128xf32> -> vector<16x128xf32>
    %c0_16 = arith.constant 0 : index
    %c0_17 = arith.constant 0 : index
    %19 = vector.load %arg6[%c0_16, %c0_17] : memref<1x128xf32, #tpu.memory_space<vmem>>, vector<1x128xf32>
    %20 = vector.broadcast %19 : vector<1x128xf32> to vector<16x128xf32>
    %21 = arith.addf %18, %20 : vector<16x128xf32>
    %c0_18 = arith.constant 0 : index
    %c0_19 = arith.constant 0 : index
    %22 = vector.load %arg1[%c0_18, %c0_19] : memref<16x128xbf16, #tpu.memory_space<vmem>>, vector<16x128xbf16>
    %23 = arith.extf %22 : vector<16x128xbf16> to vector<16x128xf32>
    %24 = arith.subf %21, %23 : vector<16x128xf32>
    %25 = arith.addf %24, %14 : vector<16x128xf32>
    %c0_20 = arith.constant 0 : index
    %c0_21 = arith.constant 0 : index
    %26 = vector.load %arg11[%c0_20, %c0_21] : memref<128x128xbf16, #tpu.memory_space<vmem>>, vector<128x128xbf16>
    %27 = arith.truncf %25 : vector<16x128xf32> to vector<16x128xbf16>
    %cst_22 = arith.constant dense<0.000000e+00> : vector<16x128xf32>
    %28 = tpu.matmul %27, %26, %cst_22 {dimension_numbers = #tpu.dot_dimension_numbers<[1], [0], [0], [1], [0, 0, 1, 1], [], []>} : vector<16x128xbf16>, vector<128x128xbf16>, vector<16x128xf32> -> vector<16x128xf32>
    %c0_23 = arith.constant 0 : index
    %c0_24 = arith.constant 0 : index
    %29 = vector.load %arg12[%c0_23, %c0_24] : memref<1x128xf32, #tpu.memory_space<vmem>>, vector<1x128xf32>
    %30 = vector.broadcast %29 : vector<1x128xf32> to vector<16x128xf32>
    %31 = arith.addf %28, %30 : vector<16x128xf32>
    %cst_25 = arith.constant 0.000000e+00 : f32
    %32 = vector.broadcast %cst_25 : f32 to vector<16x128xf32>
    %33 = arith.maximumf %31, %32 : vector<16x128xf32>
    %c0_26 = arith.constant 0 : index
    %c0_27 = arith.constant 0 : index
    %34 = vector.load %arg13[%c0_26, %c0_27] : memref<128x128xbf16, #tpu.memory_space<vmem>>, vector<128x128xbf16>
    %35 = arith.truncf %33 : vector<16x128xf32> to vector<16x128xbf16>
    %cst_28 = arith.constant dense<0.000000e+00> : vector<16x128xf32>
    %36 = tpu.matmul %35, %34, %cst_28 {dimension_numbers = #tpu.dot_dimension_numbers<[1], [0], [0], [1], [0, 0, 1, 1], [], []>} : vector<16x128xbf16>, vector<128x128xbf16>, vector<16x128xf32> -> vector<16x128xf32>
    %c0_29 = arith.constant 0 : index
    %c0_30 = arith.constant 0 : index
    %37 = vector.load %arg14[%c0_29, %c0_30] : memref<1x128xf32, #tpu.memory_space<vmem>>, vector<1x128xf32>
    %38 = vector.broadcast %37 : vector<1x128xf32> to vector<16x128xf32>
    %39 = arith.addf %36, %38 : vector<16x128xf32>
    %c32_i32 = arith.constant 32 : i32
    %40 = tpu.dynamic_rotate %39 by %c32_i32 dim 1 : vector<16x128xf32>, i32 -> vector<16x128xf32>
    %41 = arith.maximumf %39, %40 : vector<16x128xf32>
    %c64_i32 = arith.constant 64 : i32
    %42 = tpu.dynamic_rotate %41 by %c64_i32 dim 1 : vector<16x128xf32>, i32 -> vector<16x128xf32>
    %43 = arith.maximumf %41, %42 : vector<16x128xf32>
    %44 = arith.subf %39, %43 : vector<16x128xf32>
    %45 = math.exp %44 : vector<16x128xf32>
    %c32_i32_31 = arith.constant 32 : i32
    %46 = tpu.dynamic_rotate %45 by %c32_i32_31 dim 1 : vector<16x128xf32>, i32 -> vector<16x128xf32>
    %47 = arith.addf %45, %46 : vector<16x128xf32>
    %c64_i32_32 = arith.constant 64 : i32
    %48 = tpu.dynamic_rotate %47 by %c64_i32_32 dim 1 : vector<16x128xf32>, i32 -> vector<16x128xf32>
    %49 = arith.addf %47, %48 : vector<16x128xf32>
    %50 = arith.divf %45, %49 : vector<16x128xf32>
    %c0_33 = arith.constant 0 : index
    %c0_34 = arith.constant 0 : index
    %51 = vector.load %arg2[%c0_33, %c0_34] : memref<16x128xbf16, #tpu.memory_space<vmem>>, vector<16x128xbf16>
    %52 = arith.extf %51 : vector<16x128xbf16> to vector<16x128xf32>
    %53 = arith.addf %52, %14 : vector<16x128xf32>
    %54 = arith.mulf %50, %53 : vector<16x128xf32>
    %c0_35 = arith.constant 0 : index
    %c0_36 = arith.constant 0 : index
    %55 = vector.load %arg15[%c0_35, %c0_36] : memref<128x32xbf16, #tpu.memory_space<vmem>>, vector<128x32xbf16>
    %56 = arith.truncf %54 : vector<16x128xf32> to vector<16x128xbf16>
    %cst_37 = arith.constant dense<0.000000e+00> : vector<16x32xf32>
    %57 = tpu.matmul %56, %55, %cst_37 {dimension_numbers = #tpu.dot_dimension_numbers<[1], [0], [0], [1], [0, 0, 1, 1], [], []>} : vector<16x128xbf16>, vector<128x32xbf16>, vector<16x32xf32> -> vector<16x32xf32>
    %c0_38 = arith.constant 0 : index
    %c0_39 = arith.constant 0 : index
    %58 = vector.load %arg16[%c0_38, %c0_39] : memref<1x32xf32, #tpu.memory_space<vmem>>, vector<1x32xf32>
    %59 = vector.broadcast %58 : vector<1x32xf32> to vector<16x32xf32>
    %60 = arith.addf %57, %59 : vector<16x32xf32>
    %61 = arith.addf %60, %15 : vector<16x32xf32>
    %c0_40 = arith.constant 0 : index
    %c0_41 = arith.constant 0 : index
    %62 = vector.load %arg17[%c0_40, %c0_41] : memref<16x32xf32, #tpu.memory_space<vmem>>, vector<16x32xf32>
    tpu.vector_store %arg17[%c0_40, %c0_41], %61 {strides = array<i32>} : memref<16x32xf32, #tpu.memory_space<vmem>>, vector<16x32xf32>,
    %c0_42 = arith.constant 0 : index
    %c0_43 = arith.constant 0 : index
    %63 = vector.load %arg18[%c0_42, %c0_43] : memref<16x128xf32, #tpu.memory_space<vmem>>, vector<16x128xf32>
    tpu.vector_store %arg18[%c0_42, %c0_43], %50 {strides = array<i32>} : memref<16x128xf32, #tpu.memory_space<vmem>>, vector<16x128xf32>,
    return
  }
  func.func @transform_0(%arg0: i32) -> (i32, i32) {
    %c0_i32 = arith.constant 0 : i32
    %c0_i32_0 = arith.constant 0 : i32
    return %arg0, %c0_i32 : i32, i32
  }
  func.func @transform_1(%arg0: i32) -> (i32, i32) {
    %c0_i32 = arith.constant 0 : i32
    %c0_i32_0 = arith.constant 0 : i32
    return %arg0, %c0_i32 : i32, i32
  }
  func.func @transform_2(%arg0: i32) -> (i32, i32) {
    %c0_i32 = arith.constant 0 : i32
    %c0_i32_0 = arith.constant 0 : i32
    return %arg0, %c0_i32 : i32, i32
  }
  func.func @transform_3(%arg0: i32) -> (i32, i32) {
    %c0_i32 = arith.constant 0 : i32
    %c0_i32_0 = arith.constant 0 : i32
    return %arg0, %c0_i32 : i32, i32
  }
  func.func @transform_4(%arg0: i32) -> (i32, i32) {
    %c0_i32 = arith.constant 0 : i32
    %c0_i32_0 = arith.constant 0 : i32
    %c0_i32_1 = arith.constant 0 : i32
    return %c0_i32, %c0_i32_0 : i32, i32
  }
  func.func @transform_5(%arg0: i32) -> (i32, i32) {
    %c0_i32 = arith.constant 0 : i32
    %c0_i32_0 = arith.constant 0 : i32
    %c0_i32_1 = arith.constant 0 : i32
    return %c0_i32, %c0_i32_0 : i32, i32
  }
  func.func @transform_6(%arg0: i32) -> (i32, i32) {
    %c0_i32 = arith.constant 0 : i32
    %c0_i32_0 = arith.constant 0 : i32
    %c0_i32_1 = arith.constant 0 : i32
    return %c0_i32, %c0_i32_0 : i32, i32
  }
  func.func @transform_7(%arg0: i32) -> (i32, i32) {
    %c0_i32 = arith.constant 0 : i32
    %c0_i32_0 = arith.constant 0 : i32
    %c0_i32_1 = arith.constant 0 : i32
    return %c0_i32, %c0_i32_0 : i32, i32
  }
  func.func @transform_8(%arg0: i32) -> (i32, i32) {
    %c0_i32 = arith.constant 0 : i32
    %c0_i32_0 = arith.constant 0 : i32
    %c0_i32_1 = arith.constant 0 : i32
    return %c0_i32, %c0_i32_0 : i32, i32
  }
  func.func @transform_9(%arg0: i32) -> (i32, i32) {
    %c0_i32 = arith.constant 0 : i32
    %c0_i32_0 = arith.constant 0 : i32
    %c0_i32_1 = arith.constant 0 : i32
    return %c0_i32, %c0_i32_0 : i32, i32
  }
  func.func @transform_10(%arg0: i32) -> (i32, i32) {
    %c0_i32 = arith.constant 0 : i32
    %c0_i32_0 = arith.constant 0 : i32
    %c0_i32_1 = arith.constant 0 : i32
    return %c0_i32, %c0_i32_0 : i32, i32
  }
  func.func @transform_11(%arg0: i32) -> (i32, i32) {
    %c0_i32 = arith.constant 0 : i32
    %c0_i32_0 = arith.constant 0 : i32
    %c0_i32_1 = arith.constant 0 : i32
    return %c0_i32, %c0_i32_0 : i32, i32
  }
  func.func @transform_12(%arg0: i32) -> (i32, i32) {
    %c0_i32 = arith.constant 0 : i32
    %c0_i32_0 = arith.constant 0 : i32
    %c0_i32_1 = arith.constant 0 : i32
    return %c0_i32, %c0_i32_0 : i32, i32
  }
  func.func @transform_13(%arg0: i32) -> (i32, i32) {
    %c0_i32 = arith.constant 0 : i32
    %c0_i32_0 = arith.constant 0 : i32
    %c0_i32_1 = arith.constant 0 : i32
    return %c0_i32, %c0_i32_0 : i32, i32
  }
  func.func @transform_14(%arg0: i32) -> (i32, i32) {
    %c0_i32 = arith.constant 0 : i32
    %c0_i32_0 = arith.constant 0 : i32
    %c0_i32_1 = arith.constant 0 : i32
    return %c0_i32, %c0_i32_0 : i32, i32
  }
  func.func @transform_15(%arg0: i32) -> (i32, i32) {
    %c0_i32 = arith.constant 0 : i32
    %c0_i32_0 = arith.constant 0 : i32
    %c0_i32_1 = arith.constant 0 : i32
    return %c0_i32, %c0_i32_0 : i32, i32
  }
  func.func @transform_16(%arg0: i32) -> (i32, i32) {
    %c0_i32 = arith.constant 0 : i32
    %c0_i32_0 = arith.constant 0 : i32
    return %arg0, %c0_i32 : i32, i32
  }
  func.func @transform_17(%arg0: i32) -> (i32, i32) {
    %c0_i32 = arith.constant 0 : i32
    %c0_i32_0 = arith.constant 0 : i32
    return %arg0, %c0_i32 : i32, i32
  }
}

</mosaic_0001>

<llo_original>
// kernel: neg.1
$region0: #{neg.1}
  #allocation0 [shape = 's32[1]{0}', space=sflag, size = 0x4, scoped, tag = 'scoped memory for neg.1']
  %s0 = inlined_call_operand.vmem [shape: f32[2,16,16], index: 0, kind: input, shape index: {}]
  %s1 = inlined_call_operand.vmem [shape: f32[2,16,16], index: 1, kind: output, shape index: {}]
  %v2 = vld [vmem:[%s0] sm:$0xff]
  %3 = xla_tuple %v2
  %4 = xla_tuple %3
  %v5 = vxor.u32 %v2, 2147483648
  %6 = xla_tuple %v5
  %7 = vst [vmem:[%s1] sm:$0xff] %v5
  %s8 = scalar_lea.vmem %s0, 16
  %v9 = vld [vmem:[%s8] sm:$0xff]
  %10 = xla_tuple %v9
  %11 = xla_tuple %10
  %v12 = vxor.u32 %v9, 2147483648
  %13 = xla_tuple %v12
  %s14 = scalar_lea.vmem %s1, 16
  %15 = vst [vmem:[%s14] sm:$0xff] %v12
  %s16 = scalar_lea.vmem %s0, 8
  %v17 = vld [vmem:[%s16] sm:$0xff]
  %18 = xla_tuple %v17
  %19 = xla_tuple %18
  %v20 = vxor.u32 %v17, 2147483648
  %21 = xla_tuple %v20
  %s22 = scalar_lea.vmem %s1, 8
  %23 = vst [vmem:[%s22] sm:$0xff] %v20
  %s24 = scalar_lea.vmem %s0, 24
  %v25 = vld [vmem:[%s24] sm:$0xff]
  %26 = xla_tuple %v25
  %27 = xla_tuple %26
  %v28 = vxor.u32 %v25, 2147483648
  %29 = xla_tuple %v28
  %s30 = scalar_lea.vmem %s1, 24
  %31 = vst [vmem:[%s30] sm:$0xff] %v28

// kernel: transformer_block_forward.2
$region0: #{transformer_block_forward.2}
  #allocation0 [shape = 'u32[]', space=smem, size = 0x4, offset = 0x4, fixed_abs, tag = 'smem constant byte address 0x4 - core index']
  #allocation1 [shape = 'u32[144,128]{1,0:T(1,128)}', space=vmem, size = 0x12000, scoped, tag = 'internal scratch']
  %s0 = inlined_call_operand.vmem [shape: f32[32,32], index: 0, kind: input, shape index: {}]
  %s1 = inlined_call_operand.vmem [shape: bf16[32,64], index: 1, kind: input, shape index: {}]
  %s2 = inlined_call_operand.vmem [shape: f32[1,64], index: 2, kind: input, shape index: {}]
  %s3 = inlined_call_operand.vmem [shape: bf16[32,32], index: 3, kind: output, shape index: {0}]
  %s4 = inlined_call_operand.vmem [shape: bf16[32,32], index: 4, kind: output, shape index: {1}]
  %5 = xla_tuple %s3, %s4
  %s6 = sld [smem:[#allocation0]]
  $region53: #{transformer_block_forward.2} parent=0
    _
  %s8 = ssub.s32 1, %s6
  %s9 = scalar_select 0, %s8, %s6
  loop: start=0, step=1, limit=4
  $region2: #{transformer_block_forward.2} parent=0 // loop_pre_header
    _
  $region3: #{transformer_block_forward.2} parent=0 // loop_header
    %s11 = sphi 0, %s15
    %p12 = scmp.ge.s32.totalorder %s11, 4
    %s21 = sphi 0, %s23
    %s24 = sphi 0, %s21
    %s25 = sphi 0, %s24
    %s41 = sphi 0, %s25
    %s45 = sphi 0, %s45
    %s47 = sphi 0, %s45
    %s48 = sphi 0, %s47
    %s62 = sphi 0, %s48
    %s66 = sphi 0, %s66
    %s68 = sphi 0, %s66
    %s69 = sphi 0, %s68
    %s83 = sphi 0, %s69
    %s89 = sphi 0, %s91
    %s92 = sphi 0, %s89
    %s93 = sphi 0, %s92
    %s109 = sphi 0, %s93
    %s115 = sphi 0, %s117
    %s118 = sphi 0, %s115
    %s119 = sphi 0, %s118
    %s135 = sphi 0, %s119
  $region4: #{transformer_block_forward.2} parent=0 // loop_header_branch
    %14 = sbr.rel (%p12) target = $region8
  $region5: #{transformer_block_forward.2} parent=0 // loop_body
    %s16 = ssub.s32 %s11, 1
    %s17 = ssub.s32 %s11, 2
    %s18 = sadd.s32 %s11, 1
    %s19 = ssub.s32 %s11, %s18
    %p20 = scmp.eq.s32.totalorder %s19, 0
    %s22 = sadd.s32 %s21, 1
    %s23 = scalar_select %p20, %s21, %s22
    %p26 = pneg %p20
    %p27 = scmp.eq.s32.totalorder %s11, 1
    %p28 = por %p26, %p27
    %p29 = scmp.ne.s32.totalorder %s21, %s24
    %p30 = scmp.eq.s32.totalorder %s11, 0
    %p31 = por %p29, %p30
    %p32 = scmp.ne.s32.totalorder %s21, %s24
    %p33 = scmp.eq.s32.totalorder %s16, 1
    %p34 = por %p32, %p33
    %p35 = scmp.ne.s32.totalorder %s24, %s25
    %p36 = scmp.eq.s32.totalorder %s16, 0
    %p37 = por %p35, %p36
    %p38 = scmp.ne.s32.totalorder %s24, %s25
    %p39 = scmp.eq.s32.totalorder %s17, 1
    %p40 = por %p38, %p39
    %p42 = scmp.ne.s32.totalorder %s25, %s41
    %p43 = scmp.eq.s32.totalorder %s17, 0
    %p44 = por %p42, %p43
    %s46 = sadd.s32 %s45, 1
    %p49 = scmp.eq.s32.totalorder %s11, 1
    %p50 = scmp.ne.s32.totalorder %s45, %s47
    %p51 = scmp.eq.s32.totalorder %s11, 0
    %p52 = por %p50, %p51
    %p53 = scmp.ne.s32.totalorder %s45, %s47
    %p54 = scmp.eq.s32.totalorder %s16, 1
    %p55 = por %p53, %p54
    %p56 = scmp.ne.s32.totalorder %s47, %s48
    %p57 = scmp.eq.s32.totalorder %s16, 0
    %p58 = por %p56, %p57
    %p59 = scmp.ne.s32.totalorder %s47, %s48
    %p60 = scmp.eq.s32.totalorder %s17, 1
    %p61 = por %p59, %p60
    %p63 = scmp.ne.s32.totalorder %s48, %s62
    %p64 = scmp.eq.s32.totalorder %s17, 0
    %p65 = por %p63, %p64
    %s67 = sadd.s32 %s66, 1
    %p70 = scmp.eq.s32.totalorder %s11, 1
    %p71 = scmp.ne.s32.totalorder %s66, %s68
    %p72 = scmp.eq.s32.totalorder %s11, 0
    %p73 = por %p71, %p72
    %p74 = scmp.ne.s32.totalorder %s66, %s68
    %p75 = scmp.eq.s32.totalorder %s16, 1
    %p76 = por %p74, %p75
    %p77 = scmp.ne.s32.totalorder %s68, %s69
    %p78 = scmp.eq.s32.totalorder %s16, 0
    %p79 = por %p77, %p78
    %p80 = scmp.ne.s32.totalorder %s68, %s69
    %p81 = scmp.eq.s32.totalorder %s17, 1
    %p82 = por %p80, %p81
    %p84 = scmp.ne.s32.totalorder %s69, %s83
    %p85 = scmp.eq.s32.totalorder %s17, 0
    %p86 = por %p84, %p85
    %s87 = ssub.s32 %s11, %s18
    %p88 = scmp.eq.s32.totalorder %s87, 0
    %s90 = sadd.s32 %s89, 1
    %s91 = scalar_select %p88, %s89, %s90
    %p94 = pneg %p88
    %p95 = scmp.eq.s32.totalorder %s11, 1
    %p96 = por %p94, %p95
    %p97 = scmp.ne.s32.totalorder %s89, %s92
    %p98 = scmp.eq.s32.totalorder %s11, 0
    %p99 = por %p97, %p98
    %p100 = scmp.ne.s32.totalorder %s89, %s92
    %p101 = scmp.eq.s32.totalorder %s16, 1
    %p102 = por %p100, %p101
    %p103 = scmp.ne.s32.totalorder %s92, %s93
    %p104 = scmp.eq.s32.totalorder %s16, 0
    %p105 = por %p103, %p104
    %p106 = scmp.ne.s32.totalorder %s92, %s93
    %p107 = scmp.eq.s32.totalorder %s17, 1
    %p108 = por %p106, %p107
    %p110 = scmp.ne.s32.totalorder %s93, %s109
    %p111 = scmp.eq.s32.totalorder %s17, 0
    %p112 = por %p110, %p111
    %s113 = ssub.s32 %s11, %s18
    %p114 = scmp.eq.s32.totalorder %s113, 0
    %s116 = sadd.s32 %s115, 1
    %s117 = scalar_select %p114, %s115, %s116
    %p120 = pneg %p114
    %p121 = scmp.eq.s32.totalorder %s11, 1
    %p122 = por %p120, %p121
    %p123 = scmp.ne.s32.totalorder %s115, %s118
    %p124 = scmp.eq.s32.totalorder %s11, 0
    %p125 = por %p123, %p124
    %p126 = scmp.ne.s32.totalorder %s115, %s118
    %p127 = scmp.eq.s32.totalorder %s16, 1
    %p128 = por %p126, %p127
    %p129 = scmp.ne.s32.totalorder %s118, %s119
    %p130 = scmp.eq.s32.totalorder %s16, 0
    %p131 = por %p129, %p130
    %p132 = scmp.ne.s32.totalorder %s118, %s119
    %p133 = scmp.eq.s32.totalorder %s17, 1
    %p134 = por %p132, %p133
    %p136 = scmp.ne.s32.totalorder %s119, %s135
    %p137 = scmp.eq.s32.totalorder %s17, 0
    %p138 = por %p136, %p137
    %p139 = scmp.le.s32.totalorder 1, %s11
    %p140 = scmp.lt.s32.totalorder %s11, 3
    %p141 = pnand %p139, %p140
    %p142 = pneg %p141
    // Predicated region
    $region9: #{transformer_block_forward.2} parent=5 // pred_check
      _
    $region10: #{transformer_block_forward.2} parent=5 // pred_check_branch
      %144 = sbr.rel (%p141) target = $region12
    $region11: #{transformer_block_forward.2} parent=5 // pred_region
      %s145 = ssub.s32 %s11, 1
      // Predicated region
      $region13: #{transformer_block_forward.2} parent=11 // pred_check
        %p146 = pneg %p58
      $region14: #{transformer_block_forward.2} parent=11 // pred_check_branch
        %148 = sbr.rel (%p146) target = $region16
      $region15: #{transformer_block_forward.2} parent=11 // pred_region
        _
      $region16: #{transformer_block_forward.2} parent=11 // pred_fallthru
        _
      // Predicated region
      $region17: #{transformer_block_forward.2} parent=11 // pred_check
        %p149 = pneg %p79
      $region18: #{transformer_block_forward.2} parent=11 // pred_check_branch
        %151 = sbr.rel (%p149) target = $region20
      $region19: #{transformer_block_forward.2} parent=11 // pred_region
        _
      $region20: #{transformer_block_forward.2} parent=11 // pred_fallthru
        _
    $region12: #{transformer_block_forward.2} parent=5 // pred_fallthru
      _
    %p152 = scmp.lt.s32.totalorder %s11, 2
    // Predicated region
    $region21: #{transformer_block_forward.2} parent=5 // pred_check
      %p153 = pneg %p152
    $region22: #{transformer_block_forward.2} parent=5 // pred_check_branch
      %155 = sbr.rel (%p153) target = $region24
    $region23: #{transformer_block_forward.2} parent=5 // pred_region
      // Predicated region
      $region25: #{transformer_block_forward.2} parent=23 // pred_check
        %p156 = pneg %p31
      $region26: #{transformer_block_forward.2} parent=23 // pred_check_branch
        %158 = sbr.rel (%p156) target = $region28
      $region27: #{transformer_block_forward.2} parent=23 // pred_region
        %s159 = smul.u32 2, %s11
        %p160 = scmp.lt.s32.totalorder %s159, 3
        %s161 = scalar_select %p160, %s159, 3
        %s162 = smul.addr %s161, 8
        %s163 = scalar_lea.vmem %s0, %s162
        %s164 = smul.u32 2, %s11
      $region28: #{transformer_block_forward.2} parent=23 // pred_fallthru
        _
    $region24: #{transformer_block_forward.2} parent=5 // pred_fallthru
      _
    %p165 = scmp.le.s32.totalorder 1, %s11
    %p166 = scmp.lt.s32.totalorder %s11, 3
    %p167 = pnand %p165, %p166
    %p168 = pneg %p167
    // Predicated region
    $region29: #{transformer_block_forward.2} parent=5 // pred_check
      _
    $region30: #{transformer_block_forward.2} parent=5 // pred_check_branch
      %170 = sbr.rel (%p167) target = $region32
    $region31: #{transformer_block_forward.2} parent=5 // pred_region
      %s171 = ssub.s32 %s11, 1
      %s172 = smul.u32 2, %s16
      %p173 = scmp.lt.s32.totalorder %s172, 3
      %s174 = scalar_select %p173, %s172, 3
      %s175 = smul.addr %s174, 8
      %s176 = scalar_lea.vmem %s0, %s175
      %p177 = pneg %p37
      %p178 = pneg %p34
      %p179 = pneg %p58
      %p180 = pneg %p55
      %p181 = pneg %p79
      %p182 = pneg %p76
      %p183 = pneg %p105
      %p184 = pneg %p102
      %s185 = smul.u32 2, %s16
      %p186 = scmp.lt.s32.totalorder %s185, 3
      %s187 = scalar_select %p186, %s185, 3
      %s188 = smul.addr %s187, 4
      %s189 = scalar_lea.vmem %s3, %s188
      %p190 = pneg %p131
      %p191 = pneg %p128
      %s192 = smul.u32 2, %s16
      %p193 = scmp.lt.s32.totalorder %s192, 3
      %s194 = scalar_select %p193, %s192, 3
      %s195 = smul.addr %s194, 4
      %s196 = scalar_lea.vmem %s4, %s195
      %s197 = smul.u32 2, %s16
      %p198 = scmp.lt.s32.totalorder %s197, 3
      %s199 = scalar_select %p198, %s197, 3
      %s200 = smul.addr %s199, 8
      %s201 = scalar_lea.vmem %s0, %s200
      %s202 = smul.u32 2, %s16
      %s203 = smul.u32 2, %s16
      %p204 = scmp.lt.s32.totalorder %s203, 3
      %s205 = scalar_select %p204, %s203, 3
      %s206 = smul.addr %s205, 4
      %s207 = scalar_lea.vmem %s3, %s206
      %s208 = smul.u32 2, %s16
      %s209 = smul.u32 2, %s16
      %p210 = scmp.lt.s32.totalorder %s209, 3
      %s211 = scalar_select %p210, %s209, 3
      %s212 = smul.addr %s211, 4
      %s213 = scalar_lea.vmem %s4, %s212
      %s214 = smul.u32 2, %s16
      %v216 = vld [vmem:[%s201] sm:$0xff]
      %v217 = vld [vmem:[%s201 + $0x8] sm:$0xff]
      %v218 = vld [vmem:[%s1] sm:$0xf]
      %v219 = vld [vmem:[%s1 + $0x4] sm:$0xf]
      %v220 = vld [vmem:[%s1 + $0x8] sm:$0xf]
      %v221 = vld [vmem:[%s1 + $0xc] sm:$0xf]
      %v222 = vpack.c.bf16 %v217, %v216
      %v223 = vld [vmem:[%s2] sm:$0x1]
      %v225 = vlaneseq
      %v226 = vshrl.u32 %v225, 7
      %v227 = vsub.s32 0, %v226
      %v228 = vrot.slane %v223, %v227
      %v234 = vunpack.c.l.b16 %v218
      %v235 = vunpack.c.l.b16 %v219
      %v236 = vunpack.c.l.b16 %v220
      %v237 = vunpack.c.l.b16 %v221
      %v238 = vpack.c.b16 %v235, %v234
      %v239 = vpack.c.b16 %v237, %v236
      %vm242 = vcmask 261120
      %v244 = vsel %vm242, %v222, 0
      %246 = vmatprep.subr.bf16.mxu0 0
      %247 = vmatpush1.bf16.msra.mxu0 %v238
      %248 = vmatprep.subr.bf16.mxu0 0
      %249 = vmatpush1.bf16.msra.mxu0 %v239
      %250 = vmatprep.subr.bf16.mxu0 0
      %251 = vmatpush1.bf16.msra.mxu0 0
      %252 = vmatprep.subr.bf16.mxu0 0
      %253 = vmatpush1.bf16.msra.mxu0 0
      %254 = vmatprep.subr.bf16.mxu0 0
      %255 = vmatpush1.bf16.msra.mxu0 0
      %256 = vmatprep.subr.bf16.mxu0 0
      %257 = vmatpush1.bf16.msra.mxu0 0
      %258 = vmatprep.subr.bf16.mxu0 0
      %259 = vmatpush1.bf16.msra.mxu0 0
      %260 = vmatprep.subr.bf16.mxu0 0
      %261 = vmatpush1.bf16.msra.mxu0 0
      %262 = vmatprep.subr.bf16.mxu0 0
      %263 = vmatpush1.bf16.msra.mxu0 0
      %264 = vmatprep.subr.bf16.mxu0 0
      %265 = vmatpush1.bf16.msra.mxu0 0
      %266 = vmatprep.subr.bf16.mxu0 0
      %267 = vmatpush1.bf16.msra.mxu0 0
      %268 = vmatprep.subr.bf16.mxu0 0
      %269 = vmatpush1.bf16.msra.mxu0 0
      %270 = vmatprep.subr.bf16.mxu0 0
      %271 = vmatpush1.bf16.msra.mxu0 0
      %272 = vmatprep.subr.bf16.mxu0 0
      %273 = vmatpush1.bf16.msra.mxu0 0
      %274 = vmatprep.subr.bf16.mxu0 0
      %275 = vmatpush1.bf16.msra.mxu0 0
      %276 = vmatprep.subr.bf16.mxu0 0
      %277 = vmatpush1.bf16.msra.mxu0 0
      %278 = vmatprep.mubr.bf16.mxu0 0
      %279 = vmatmul.mubr.bf16.gmra.mrb[0].mxu0 %v244
      %v280 = vpop.f32.mrb[0].mxu0
      %v281 = vadd.f32 %v228, %v280
      %v282 = vpop.f32.mrb[0].mxu0
      %v283 = vpop.f32.mrb[0].mxu0
      %v284 = vadd.f32 %v228, %v283
      %v285 = vpop.f32.mrb[0].mxu0
      %286 = vdwg.mxu0
      %v287 = vpack.c.bf16 %v284, %v281
      %v289 = vunpack.c.l.b16 %v287
      %v290 = vunpack.c.h.b16 %v287
      %v291 = vpack.c.b16 %v289, %v289
      %v292 = vpack.c.b16 %v290, %v290
      %vm295 = vcmask 257024
      %296 = vst.msk [vmem:[%s207] sm:$0xf] %vm295, %v291
      %297 = vst.msk [vmem:[%s207 + $0x4] sm:$0xf] %vm295, %v292
      %298 = vrot.lane.b32.xlu0 %v291, 96
      %v299 = vpop.permute.xlu0 %298
      %300 = vrot.lane.b32.xlu0 %v292, 96
      %v301 = vpop.permute.xlu0 %300
      %304 = vst.msk [vmem:[%s213] sm:$0xf] %vm295, %v299
      %305 = vst.msk [vmem:[%s213 + $0x4] sm:$0xf] %vm295, %v301
      %s306 = smul.u32 2, %s16
      %p307 = scmp.lt.s32.totalorder %s306, 3
      %s308 = scalar_select %p307, %s306, 3
      %s309 = smul.addr %s308, 4
      %s310 = scalar_lea.vmem %s3, %s309
      %s311 = smul.u32 2, %s16
      %p312 = scmp.lt.s32.totalorder %s311, 3
      %s313 = scalar_select %p312, %s311, 3
      %s314 = smul.addr %s313, 4
      %s315 = scalar_lea.vmem %s4, %s314
      // Predicated region
      $region33: #{transformer_block_forward.2} parent=31 // pred_check
        %p316 = pneg %p102
      $region34: #{transformer_block_forward.2} parent=31 // pred_check_branch
        %318 = sbr.rel (%p316) target = $region36
      $region35: #{transformer_block_forward.2} parent=31 // pred_region
        %s319 = smul.u32 2, %s16
      $region36: #{transformer_block_forward.2} parent=31 // pred_fallthru
        _
      // Predicated region
      $region37: #{transformer_block_forward.2} parent=31 // pred_check
        %p320 = pneg %p128
      $region38: #{transformer_block_forward.2} parent=31 // pred_check_branch
        %322 = sbr.rel (%p320) target = $region40
      $region39: #{transformer_block_forward.2} parent=31 // pred_region
        %s323 = smul.u32 2, %s16
      $region40: #{transformer_block_forward.2} parent=31 // pred_fallthru
        _
    $region32: #{transformer_block_forward.2} parent=5 // pred_fallthru
      _
    %p324 = scmp.le.s32.totalorder 2, %s11
    // Predicated region
    $region41: #{transformer_block_forward.2} parent=5 // pred_check
      %p325 = pneg %p324
    $region42: #{transformer_block_forward.2} parent=5 // pred_check_branch
      %327 = sbr.rel (%p325) target = $region44
    $region43: #{transformer_block_forward.2} parent=5 // pred_region
      %s328 = ssub.s32 %s11, 2
      // Predicated region
      $region45: #{transformer_block_forward.2} parent=43 // pred_check
        %p329 = pneg %p108
      $region46: #{transformer_block_forward.2} parent=43 // pred_check_branch
        %331 = sbr.rel (%p329) target = $region48
      $region47: #{transformer_block_forward.2} parent=43 // pred_region
        %s332 = smul.u32 2, %s17
        %p333 = scmp.lt.s32.totalorder %s332, 3
        %s334 = scalar_select %p333, %s332, 3
        %s335 = smul.addr %s334, 4
        %s336 = scalar_lea.vmem %s3, %s335
      $region48: #{transformer_block_forward.2} parent=43 // pred_fallthru
        _
      // Predicated region
      $region49: #{transformer_block_forward.2} parent=43 // pred_check
        %p337 = pneg %p134
      $region50: #{transformer_block_forward.2} parent=43 // pred_check_branch
        %339 = sbr.rel (%p337) target = $region52
      $region51: #{transformer_block_forward.2} parent=43 // pred_region
        %s340 = smul.u32 2, %s17
        %p341 = scmp.lt.s32.totalorder %s340, 3
        %s342 = scalar_select %p341, %s340, 3
        %s343 = smul.addr %s342, 4
        %s344 = scalar_lea.vmem %s4, %s343
      $region52: #{transformer_block_forward.2} parent=43 // pred_fallthru
        _
    $region44: #{transformer_block_forward.2} parent=5 // pred_fallthru
      _
  $region6: #{transformer_block_forward.2} parent=0 // loop_footer
    %s15 = sadd.s32 1, %s11
  $region7: #{transformer_block_forward.2} parent=0 // loop_footer_branch
    %10 = sbr.rel target = $region3
  $region8: #{transformer_block_forward.2} parent=0 // loop_exit
    _

// kernel: transformer_block_forward.3
$region0: #{transformer_block_forward.3}
  #allocation0 [shape = 'u32[]', space=smem, size = 0x4, offset = 0x4, fixed_abs, tag = 'smem constant byte address 0x4 - core index']
  #allocation1 [shape = 'u32[144,128]{1,0:T(1,128)}', space=vmem, size = 0x12000, scoped, tag = 'internal scratch']
  %s0 = inlined_call_operand.vmem [shape: bf16[32,128], index: 0, kind: input, shape index: {}]
  %s1 = inlined_call_operand.vmem [shape: bf16[32,128], index: 1, kind: input, shape index: {}]
  %s2 = inlined_call_operand.vmem [shape: f32[32,8], index: 2, kind: input, shape index: {}]
  %s3 = inlined_call_operand.vmem [shape: f32[32,32], index: 3, kind: input, shape index: {}]
  %s4 = inlined_call_operand.vmem [shape: bf16[32,128], index: 4, kind: input, shape index: {}]
  %s5 = inlined_call_operand.vmem [shape: f32[1,128], index: 5, kind: input, shape index: {}]
  %s6 = inlined_call_operand.vmem [shape: bf16[8,128], index: 6, kind: input, shape index: {}]
  %s7 = inlined_call_operand.vmem [shape: f32[1,128], index: 7, kind: input, shape index: {}]
  %s8 = inlined_call_operand.vmem [shape: bf16[128,128], index: 8, kind: input, shape index: {}]
  %s9 = inlined_call_operand.vmem [shape: f32[1,128], index: 9, kind: input, shape index: {}]
  %s10 = inlined_call_operand.vmem [shape: bf16[128,128], index: 10, kind: input, shape index: {}]
  %s11 = inlined_call_operand.vmem [shape: f32[1,128], index: 11, kind: input, shape index: {}]
  %s12 = inlined_call_operand.vmem [shape: bf16[128,128], index: 12, kind: input, shape index: {}]
  %s13 = inlined_call_operand.vmem [shape: f32[1,128], index: 13, kind: input, shape index: {}]
  %s14 = inlined_call_operand.vmem [shape: bf16[128,32], index: 14, kind: input, shape index: {}]
  %s15 = inlined_call_operand.vmem [shape: f32[1,32], index: 15, kind: input, shape index: {}]
  %s16 = inlined_call_operand.hbm [shape: f32[32,32], index: 16, kind: output, shape index: {0}]
  %s17 = inlined_call_operand.vmem [shape: f32[32,128], index: 17, kind: output, shape index: {1}]
  %18 = xla_tuple %s16, %s17
  %s19 = sld [smem:[#allocation0]]
  $region105: #{transformer_block_forward.3} parent=0
    _
  %s21 = ssub.s32 1, %s19
  %s22 = scalar_select 0, %s21, %s19
  $region1: #{transformer_block_forward.3} parent=0
    #allocation2 [shape = 'u8[16384]{0}', space=vmem, size = 0x4000, scoped, tag = 'output window, operand 0']
    #allocation3 [shape = 's32[2]{0}', space=sflag, size = 0x8, scoped, tag = 'scoped memory for transformer_block_forward.3']
    %23 = vsyncpa [#allocation3], 0
    %s24 = scalar_lea.sflag [#allocation3], 1
    %25 = vsyncpa %s24, 0
    loop: start=0, step=1, limit=4
    $region2: #{transformer_block_forward.3} parent=1 // loop_pre_header
      _
    $region3: #{transformer_block_forward.3} parent=1 // loop_header
      %s27 = sphi 0, %s31
      %p28 = scmp.ge.s32.totalorder %s27, 4
      %s37 = sphi 0, %s39
      %s40 = sphi 0, %s37
      %s41 = sphi 0, %s40
      %s57 = sphi 0, %s41
      %s63 = sphi 0, %s65
      %s66 = sphi 0, %s63
      %s67 = sphi 0, %s66
      %s83 = sphi 0, %s67
      %s89 = sphi 0, %s91
      %s92 = sphi 0, %s89
      %s93 = sphi 0, %s92
      %s109 = sphi 0, %s93
      %s115 = sphi 0, %s117
      %s118 = sphi 0, %s115
      %s119 = sphi 0, %s118
      %s135 = sphi 0, %s119
      %s139 = sphi 0, %s139
      %s141 = sphi 0, %s139
      %s142 = sphi 0, %s141
      %s156 = sphi 0, %s142
      %s160 = sphi 0, %s160
      %s162 = sphi 0, %s160
      %s163 = sphi 0, %s162
      %s177 = sphi 0, %s163
      %s181 = sphi 0, %s181
      %s183 = sphi 0, %s181
      %s184 = sphi 0, %s183
      %s198 = sphi 0, %s184
      %s202 = sphi 0, %s202
      %s204 = sphi 0, %s202
      %s205 = sphi 0, %s204
      %s219 = sphi 0, %s205
      %s223 = sphi 0, %s223
      %s225 = sphi 0, %s223
      %s226 = sphi 0, %s225
      %s240 = sphi 0, %s226
      %s244 = sphi 0, %s244
      %s246 = sphi 0, %s244
      %s247 = sphi 0, %s246
      %s261 = sphi 0, %s247
      %s265 = sphi 0, %s265
      %s267 = sphi 0, %s265
      %s268 = sphi 0, %s267
      %s282 = sphi 0, %s268
      %s286 = sphi 0, %s286
      %s288 = sphi 0, %s286
      %s289 = sphi 0, %s288
      %s303 = sphi 0, %s289
      %s307 = sphi 0, %s307
      %s309 = sphi 0, %s307
      %s310 = sphi 0, %s309
      %s324 = sphi 0, %s310
      %s328 = sphi 0, %s328
      %s330 = sphi 0, %s328
      %s331 = sphi 0, %s330
      %s345 = sphi 0, %s331
      %s349 = sphi 0, %s349
      %s351 = sphi 0, %s349
      %s352 = sphi 0, %s351
      %s366 = sphi 0, %s352
      %s370 = sphi 0, %s370
      %s372 = sphi 0, %s370
      %s373 = sphi 0, %s372
      %s387 = sphi 0, %s373
      %s393 = sphi 0, %s395
      %s396 = sphi 0, %s393
      %s397 = sphi 0, %s396
      %s413 = sphi 0, %s397
      %s419 = sphi 0, %s421
      %s422 = sphi 0, %s419
      %s423 = sphi 0, %s422
      %s439 = sphi 0, %s423
    $region4: #{transformer_block_forward.3} parent=1 // loop_header_branch
      %30 = sbr.rel (%p28) target = $region8
    $region5: #{transformer_block_forward.3} parent=1 // loop_body
      %s32 = ssub.s32 %s27, 1
      %s33 = ssub.s32 %s27, 2
      %s34 = sadd.s32 %s27, 1
      %s35 = ssub.s32 %s27, %s34
      %p36 = scmp.eq.s32.totalorder %s35, 0
      %s38 = sadd.s32 %s37, 1
      %s39 = scalar_select %p36, %s37, %s38
      %p42 = pneg %p36
      %p43 = scmp.eq.s32.totalorder %s27, 1
      %p44 = por %p42, %p43
      %p45 = scmp.ne.s32.totalorder %s37, %s40
      %p46 = scmp.eq.s32.totalorder %s27, 0
      %p47 = por %p45, %p46
      %p48 = scmp.ne.s32.totalorder %s37, %s40
      %p49 = scmp.eq.s32.totalorder %s32, 1
      %p50 = por %p48, %p49
      %p51 = scmp.ne.s32.totalorder %s40, %s41
      %p52 = scmp.eq.s32.totalorder %s32, 0
      %p53 = por %p51, %p52
      %p54 = scmp.ne.s32.totalorder %s40, %s41
      %p55 = scmp.eq.s32.totalorder %s33, 1
      %p56 = por %p54, %p55
      %p58 = scmp.ne.s32.totalorder %s41, %s57
      %p59 = scmp.eq.s32.totalorder %s33, 0
      %p60 = por %p58, %p59
      %s61 = ssub.s32 %s27, %s34
      %p62 = scmp.eq.s32.totalorder %s61, 0
      %s64 = sadd.s32 %s63, 1
      %s65 = scalar_select %p62, %s63, %s64
      %p68 = pneg %p62
      %p69 = scmp.eq.s32.totalorder %s27, 1
      %p70 = por %p68, %p69
      %p71 = scmp.ne.s32.totalorder %s63, %s66
      %p72 = scmp.eq.s32.totalorder %s27, 0
      %p73 = por %p71, %p72
      %p74 = scmp.ne.s32.totalorder %s63, %s66
      %p75 = scmp.eq.s32.totalorder %s32, 1
      %p76 = por %p74, %p75
      %p77 = scmp.ne.s32.totalorder %s66, %s67
      %p78 = scmp.eq.s32.totalorder %s32, 0
      %p79 = por %p77, %p78
      %p80 = scmp.ne.s32.totalorder %s66, %s67
      %p81 = scmp.eq.s32.totalorder %s33, 1
      %p82 = por %p80, %p81
      %p84 = scmp.ne.s32.totalorder %s67, %s83
      %p85 = scmp.eq.s32.totalorder %s33, 0
      %p86 = por %p84, %p85
      %s87 = ssub.s32 %s27, %s34
      %p88 = scmp.eq.s32.totalorder %s87, 0
      %s90 = sadd.s32 %s89, 1
      %s91 = scalar_select %p88, %s89, %s90
      %p94 = pneg %p88
      %p95 = scmp.eq.s32.totalorder %s27, 1
      %p96 = por %p94, %p95
      %p97 = scmp.ne.s32.totalorder %s89, %s92
      %p98 = scmp.eq.s32.totalorder %s27, 0
      %p99 = por %p97, %p98
      %p100 = scmp.ne.s32.totalorder %s89, %s92
      %p101 = scmp.eq.s32.totalorder %s32, 1
      %p102 = por %p100, %p101
      %p103 = scmp.ne.s32.totalorder %s92, %s93
      %p104 = scmp.eq.s32.totalorder %s32, 0
      %p105 = por %p103, %p104
      %p106 = scmp.ne.s32.totalorder %s92, %s93
      %p107 = scmp.eq.s32.totalorder %s33, 1
      %p108 = por %p106, %p107
      %p110 = scmp.ne.s32.totalorder %s93, %s109
      %p111 = scmp.eq.s32.totalorder %s33, 0
      %p112 = por %p110, %p111
      %s113 = ssub.s32 %s27, %s34
      %p114 = scmp.eq.s32.totalorder %s113, 0
      %s116 = sadd.s32 %s115, 1
      %s117 = scalar_select %p114, %s115, %s116
      %p120 = pneg %p114
      %p121 = scmp.eq.s32.totalorder %s27, 1
      %p122 = por %p120, %p121
      %p123 = scmp.ne.s32.totalorder %s115, %s118
      %p124 = scmp.eq.s32.totalorder %s27, 0
      %p125 = por %p123, %p124
      %p126 = scmp.ne.s32.totalorder %s115, %s118
      %p127 = scmp.eq.s32.totalorder %s32, 1
      %p128 = por %p126, %p127
      %p129 = scmp.ne.s32.totalorder %s118, %s119
      %p130 = scmp.eq.s32.totalorder %s32, 0
      %p131 = por %p129, %p130
      %p132 = scmp.ne.s32.totalorder %s118, %s119
      %p133 = scmp.eq.s32.totalorder %s33, 1
      %p134 = por %p132, %p133
      %p136 = scmp.ne.s32.totalorder %s119, %s135
      %p137 = scmp.eq.s32.totalorder %s33, 0
      %p138 = por %p136, %p137
      %s140 = sadd.s32 %s139, 1
      %p143 = scmp.eq.s32.totalorder %s27, 1
      %p144 = scmp.ne.s32.totalorder %s139, %s141
      %p145 = scmp.eq.s32.totalorder %s27, 0
      %p146 = por %p144, %p145
      %p147 = scmp.ne.s32.totalorder %s139, %s141
      %p148 = scmp.eq.s32.totalorder %s32, 1
      %p149 = por %p147, %p148
      %p150 = scmp.ne.s32.totalorder %s141, %s142
      %p151 = scmp.eq.s32.totalorder %s32, 0
      %p152 = por %p150, %p151
      %p153 = scmp.ne.s32.totalorder %s141, %s142
      %p154 = scmp.eq.s32.totalorder %s33, 1
      %p155 = por %p153, %p154
      %p157 = scmp.ne.s32.totalorder %s142, %s156
      %p158 = scmp.eq.s32.totalorder %s33, 0
      %p159 = por %p157, %p158
      %s161 = sadd.s32 %s160, 1
      %p164 = scmp.eq.s32.totalorder %s27, 1
      %p165 = scmp.ne.s32.totalorder %s160, %s162
      %p166 = scmp.eq.s32.totalorder %s27, 0
      %p167 = por %p165, %p166
      %p168 = scmp.ne.s32.totalorder %s160, %s162
      %p169 = scmp.eq.s32.totalorder %s32, 1
      %p170 = por %p168, %p169
      %p171 = scmp.ne.s32.totalorder %s162, %s163
      %p172 = scmp.eq.s32.totalorder %s32, 0
      %p173 = por %p171, %p172
      %p174 = scmp.ne.s32.totalorder %s162, %s163
      %p175 = scmp.eq.s32.totalorder %s33, 1
      %p176 = por %p174, %p175
      %p178 = scmp.ne.s32.totalorder %s163, %s177
      %p179 = scmp.eq.s32.totalorder %s33, 0
      %p180 = por %p178, %p179
      %s182 = sadd.s32 %s181, 1
      %p185 = scmp.eq.s32.totalorder %s27, 1
      %p186 = scmp.ne.s32.totalorder %s181, %s183
      %p187 = scmp.eq.s32.totalorder %s27, 0
      %p188 = por %p186, %p187
      %p189 = scmp.ne.s32.totalorder %s181, %s183
      %p190 = scmp.eq.s32.totalorder %s32, 1
      %p191 = por %p189, %p190
      %p192 = scmp.ne.s32.totalorder %s183, %s184
      %p193 = scmp.eq.s32.totalorder %s32, 0
      %p194 = por %p192, %p193
      %p195 = scmp.ne.s32.totalorder %s183, %s184
      %p196 = scmp.eq.s32.totalorder %s33, 1
      %p197 = por %p195, %p196
      %p199 = scmp.ne.s32.totalorder %s184, %s198
      %p200 = scmp.eq.s32.totalorder %s33, 0
      %p201 = por %p199, %p200
      %s203 = sadd.s32 %s202, 1
      %p206 = scmp.eq.s32.totalorder %s27, 1
      %p207 = scmp.ne.s32.totalorder %s202, %s204
      %p208 = scmp.eq.s32.totalorder %s27, 0
      %p209 = por %p207, %p208
      %p210 = scmp.ne.s32.totalorder %s202, %s204
      %p211 = scmp.eq.s32.totalorder %s32, 1
      %p212 = por %p210, %p211
      %p213 = scmp.ne.s32.totalorder %s204, %s205
      %p214 = scmp.eq.s32.totalorder %s32, 0
      %p215 = por %p213, %p214
      %p216 = scmp.ne.s32.totalorder %s204, %s205
      %p217 = scmp.eq.s32.totalorder %s33, 1
      %p218 = por %p216, %p217
      %p220 = scmp.ne.s32.totalorder %s205, %s219
      %p221 = scmp.eq.s32.totalorder %s33, 0
      %p222 = por %p220, %p221
      %s224 = sadd.s32 %s223, 1
      %p227 = scmp.eq.s32.totalorder %s27, 1
      %p228 = scmp.ne.s32.totalorder %s223, %s225
      %p229 = scmp.eq.s32.totalorder %s27, 0
      %p230 = por %p228, %p229
      %p231 = scmp.ne.s32.totalorder %s223, %s225
      %p232 = scmp.eq.s32.totalorder %s32, 1
      %p233 = por %p231, %p232
      %p234 = scmp.ne.s32.totalorder %s225, %s226
      %p235 = scmp.eq.s32.totalorder %s32, 0
      %p236 = por %p234, %p235
      %p237 = scmp.ne.s32.totalorder %s225, %s226
      %p238 = scmp.eq.s32.totalorder %s33, 1
      %p239 = por %p237, %p238
      %p241 = scmp.ne.s32.totalorder %s226, %s240
      %p242 = scmp.eq.s32.totalorder %s33, 0
      %p243 = por %p241, %p242
      %s245 = sadd.s32 %s244, 1
      %p248 = scmp.eq.s32.totalorder %s27, 1
      %p249 = scmp.ne.s32.totalorder %s244, %s246
      %p250 = scmp.eq.s32.totalorder %s27, 0
      %p251 = por %p249, %p250
      %p252 = scmp.ne.s32.totalorder %s244, %s246
      %p253 = scmp.eq.s32.totalorder %s32, 1
      %p254 = por %p252, %p253
      %p255 = scmp.ne.s32.totalorder %s246, %s247
      %p256 = scmp.eq.s32.totalorder %s32, 0
      %p257 = por %p255, %p256
      %p258 = scmp.ne.s32.totalorder %s246, %s247
      %p259 = scmp.eq.s32.totalorder %s33, 1
      %p260 = por %p258, %p259
      %p262 = scmp.ne.s32.totalorder %s247, %s261
      %p263 = scmp.eq.s32.totalorder %s33, 0
      %p264 = por %p262, %p263
      %s266 = sadd.s32 %s265, 1
      %p269 = scmp.eq.s32.totalorder %s27, 1
      %p270 = scmp.ne.s32.totalorder %s265, %s267
      %p271 = scmp.eq.s32.totalorder %s27, 0
      %p272 = por %p270, %p271
      %p273 = scmp.ne.s32.totalorder %s265, %s267
      %p274 = scmp.eq.s32.totalorder %s32, 1
      %p275 = por %p273, %p274
      %p276 = scmp.ne.s32.totalorder %s267, %s268
      %p277 = scmp.eq.s32.totalorder %s32, 0
      %p278 = por %p276, %p277
      %p279 = scmp.ne.s32.totalorder %s267, %s268
      %p280 = scmp.eq.s32.totalorder %s33, 1
      %p281 = por %p279, %p280
      %p283 = scmp.ne.s32.totalorder %s268, %s282
      %p284 = scmp.eq.s32.totalorder %s33, 0
      %p285 = por %p283, %p284
      %s287 = sadd.s32 %s286, 1
      %p290 = scmp.eq.s32.totalorder %s27, 1
      %p291 = scmp.ne.s32.totalorder %s286, %s288
      %p292 = scmp.eq.s32.totalorder %s27, 0
      %p293 = por %p291, %p292
      %p294 = scmp.ne.s32.totalorder %s286, %s288
      %p295 = scmp.eq.s32.totalorder %s32, 1
      %p296 = por %p294, %p295
      %p297 = scmp.ne.s32.totalorder %s288, %s289
      %p298 = scmp.eq.s32.totalorder %s32, 0
      %p299 = por %p297, %p298
      %p300 = scmp.ne.s32.totalorder %s288, %s289
      %p301 = scmp.eq.s32.totalorder %s33, 1
      %p302 = por %p300, %p301
      %p304 = scmp.ne.s32.totalorder %s289, %s303
      %p305 = scmp.eq.s32.totalorder %s33, 0
      %p306 = por %p304, %p305
      %s308 = sadd.s32 %s307, 1
      %p311 = scmp.eq.s32.totalorder %s27, 1
      %p312 = scmp.ne.s32.totalorder %s307, %s309
      %p313 = scmp.eq.s32.totalorder %s27, 0
      %p314 = por %p312, %p313
      %p315 = scmp.ne.s32.totalorder %s307, %s309
      %p316 = scmp.eq.s32.totalorder %s32, 1
      %p317 = por %p315, %p316
      %p318 = scmp.ne.s32.totalorder %s309, %s310
      %p319 = scmp.eq.s32.totalorder %s32, 0
      %p320 = por %p318, %p319
      %p321 = scmp.ne.s32.totalorder %s309, %s310
      %p322 = scmp.eq.s32.totalorder %s33, 1
      %p323 = por %p321, %p322
      %p325 = scmp.ne.s32.totalorder %s310, %s324
      %p326 = scmp.eq.s32.totalorder %s33, 0
      %p327 = por %p325, %p326
      %s329 = sadd.s32 %s328, 1
      %p332 = scmp.eq.s32.totalorder %s27, 1
      %p333 = scmp.ne.s32.totalorder %s328, %s330
      %p334 = scmp.eq.s32.totalorder %s27, 0
      %p335 = por %p333, %p334
      %p336 = scmp.ne.s32.totalorder %s328, %s330
      %p337 = scmp.eq.s32.totalorder %s32, 1
      %p338 = por %p336, %p337
      %p339 = scmp.ne.s32.totalorder %s330, %s331
      %p340 = scmp.eq.s32.totalorder %s32, 0
      %p341 = por %p339, %p340
      %p342 = scmp.ne.s32.totalorder %s330, %s331
      %p343 = scmp.eq.s32.totalorder %s33, 1
      %p344 = por %p342, %p343
      %p346 = scmp.ne.s32.totalorder %s331, %s345
      %p347 = scmp.eq.s32.totalorder %s33, 0
      %p348 = por %p346, %p347
      %s350 = sadd.s32 %s349, 1
      %p353 = scmp.eq.s32.totalorder %s27, 1
      %p354 = scmp.ne.s32.totalorder %s349, %s351
      %p355 = scmp.eq.s32.totalorder %s27, 0
      %p356 = por %p354, %p355
      %p357 = scmp.ne.s32.totalorder %s349, %s351
      %p358 = scmp.eq.s32.totalorder %s32, 1
      %p359 = por %p357, %p358
      %p360 = scmp.ne.s32.totalorder %s351, %s352
      %p361 = scmp.eq.s32.totalorder %s32, 0
      %p362 = por %p360, %p361
      %p363 = scmp.ne.s32.totalorder %s351, %s352
      %p364 = scmp.eq.s32.totalorder %s33, 1
      %p365 = por %p363, %p364
      %p367 = scmp.ne.s32.totalorder %s352, %s366
      %p368 = scmp.eq.s32.totalorder %s33, 0
      %p369 = por %p367, %p368
      %s371 = sadd.s32 %s370, 1
      %p374 = scmp.eq.s32.totalorder %s27, 1
      %p375 = scmp.ne.s32.totalorder %s370, %s372
      %p376 = scmp.eq.s32.totalorder %s27, 0
      %p377 = por %p375, %p376
      %p378 = scmp.ne.s32.totalorder %s370, %s372
      %p379 = scmp.eq.s32.totalorder %s32, 1
      %p380 = por %p378, %p379
      %p381 = scmp.ne.s32.totalorder %s372, %s373
      %p382 = scmp.eq.s32.totalorder %s32, 0
      %p383 = por %p381, %p382
      %p384 = scmp.ne.s32.totalorder %s372, %s373
      %p385 = scmp.eq.s32.totalorder %s33, 1
      %p386 = por %p384, %p385
      %p388 = scmp.ne.s32.totalorder %s373, %s387
      %p389 = scmp.eq.s32.totalorder %s33, 0
      %p390 = por %p388, %p389
      %s391 = ssub.s32 %s27, %s34
      %p392 = scmp.eq.s32.totalorder %s391, 0
      %s394 = sadd.s32 %s393, 1
      %s395 = scalar_select %p392, %s393, %s394
      %p398 = pneg %p392
      %p399 = scmp.eq.s32.totalorder %s27, 1
      %p400 = por %p398, %p399
      %p401 = scmp.ne.s32.totalorder %s393, %s396
      %p402 = scmp.eq.s32.totalorder %s27, 0
      %p403 = por %p401, %p402
      %p404 = scmp.ne.s32.totalorder %s393, %s396
      %p405 = scmp.eq.s32.totalorder %s32, 1
      %p406 = por %p404, %p405
      %p407 = scmp.ne.s32.totalorder %s396, %s397
      %p408 = scmp.eq.s32.totalorder %s32, 0
      %p409 = por %p407, %p408
      %p410 = scmp.ne.s32.totalorder %s396, %s397
      %p411 = scmp.eq.s32.totalorder %s33, 1
      %p412 = por %p410, %p411
      %p414 = scmp.ne.s32.totalorder %s397, %s413
      %p415 = scmp.eq.s32.totalorder %s33, 0
      %p416 = por %p414, %p415
      %s417 = ssub.s32 %s27, %s34
      %p418 = scmp.eq.s32.totalorder %s417, 0
      %s420 = sadd.s32 %s419, 1
      %s421 = scalar_select %p418, %s419, %s420
      %p424 = pneg %p418
      %p425 = scmp.eq.s32.totalorder %s27, 1
      %p426 = por %p424, %p425
      %p427 = scmp.ne.s32.totalorder %s419, %s422
      %p428 = scmp.eq.s32.totalorder %s27, 0
      %p429 = por %p427, %p428
      %p430 = scmp.ne.s32.totalorder %s419, %s422
      %p431 = scmp.eq.s32.totalorder %s32, 1
      %p432 = por %p430, %p431
      %p433 = scmp.ne.s32.totalorder %s422, %s423
      %p434 = scmp.eq.s32.totalorder %s32, 0
      %p435 = por %p433, %p434
      %p436 = scmp.ne.s32.totalorder %s422, %s423
      %p437 = scmp.eq.s32.totalorder %s33, 1
      %p438 = por %p436, %p437
      %p440 = scmp.ne.s32.totalorder %s423, %s439
      %p441 = scmp.eq.s32.totalorder %s33, 0
      %p442 = por %p440, %p441
      %p443 = scmp.le.s32.totalorder 1, %s27
      %p444 = scmp.lt.s32.totalorder %s27, 3
      %p445 = pnand %p443, %p444
      %p446 = pneg %p445
      // Predicated region
      $region9: #{transformer_block_forward.3} parent=5 // pred_check
        _
      $region10: #{transformer_block_forward.3} parent=5 // pred_check_branch
        %448 = sbr.rel (%p445) target = $region12
      $region11: #{transformer_block_forward.3} parent=5 // pred_region
        %s449 = ssub.s32 %s27, 1
        // Predicated region
        $region13: #{transformer_block_forward.3} parent=11 // pred_check
          %p450 = pneg %p152
        $region14: #{transformer_block_forward.3} parent=11 // pred_check_branch
          %452 = sbr.rel (%p450) target = $region16
        $region15: #{transformer_block_forward.3} parent=11 // pred_region
          _
        $region16: #{transformer_block_forward.3} parent=11 // pred_fallthru
          _
        // Predicated region
        $region17: #{transformer_block_forward.3} parent=11 // pred_check
          %p453 = pneg %p173
        $region18: #{transformer_block_forward.3} parent=11 // pred_check_branch
          %455 = sbr.rel (%p453) target = $region20
        $region19: #{transformer_block_forward.3} parent=11 // pred_region
          _
        $region20: #{transformer_block_forward.3} parent=11 // pred_fallthru
          _
        // Predicated region
        $region21: #{transformer_block_forward.3} parent=11 // pred_check
          %p456 = pneg %p194
        $region22: #{transformer_block_forward.3} parent=11 // pred_check_branch
          %458 = sbr.rel (%p456) target = $region24
        $region23: #{transformer_block_forward.3} parent=11 // pred_region
          _
        $region24: #{transformer_block_forward.3} parent=11 // pred_fallthru
          _
        // Predicated region
        $region25: #{transformer_block_forward.3} parent=11 // pred_check
          %p459 = pneg %p215
        $region26: #{transformer_block_forward.3} parent=11 // pred_check_branch
          %461 = sbr.rel (%p459) target = $region28
        $region27: #{transformer_block_forward.3} parent=11 // pred_region
          _
        $region28: #{transformer_block_forward.3} parent=11 // pred_fallthru
          _
        // Predicated region
        $region29: #{transformer_block_forward.3} parent=11 // pred_check
          %p462 = pneg %p236
        $region30: #{transformer_block_forward.3} parent=11 // pred_check_branch
          %464 = sbr.rel (%p462) target = $region32
        $region31: #{transformer_block_forward.3} parent=11 // pred_region
          _
        $region32: #{transformer_block_forward.3} parent=11 // pred_fallthru
          _
        // Predicated region
        $region33: #{transformer_block_forward.3} parent=11 // pred_check
          %p465 = pneg %p257
        $region34: #{transformer_block_forward.3} parent=11 // pred_check_branch
          %467 = sbr.rel (%p465) target = $region36
        $region35: #{transformer_block_forward.3} parent=11 // pred_region
          _
        $region36: #{transformer_block_forward.3} parent=11 // pred_fallthru
          _
        // Predicated region
        $region37: #{transformer_block_forward.3} parent=11 // pred_check
          %p468 = pneg %p278
        $region38: #{transformer_block_forward.3} parent=11 // pred_check_branch
          %470 = sbr.rel (%p468) target = $region40
        $region39: #{transformer_block_forward.3} parent=11 // pred_region
          _
        $region40: #{transformer_block_forward.3} parent=11 // pred_fallthru
          _
        // Predicated region
        $region41: #{transformer_block_forward.3} parent=11 // pred_check
          %p471 = pneg %p299
        $region42: #{transformer_block_forward.3} parent=11 // pred_check_branch
          %473 = sbr.rel (%p471) target = $region44
        $region43: #{transformer_block_forward.3} parent=11 // pred_region
          _
        $region44: #{transformer_block_forward.3} parent=11 // pred_fallthru
          _
        // Predicated region
        $region45: #{transformer_block_forward.3} parent=11 // pred_check
          %p474 = pneg %p320
        $region46: #{transformer_block_forward.3} parent=11 // pred_check_branch
          %476 = sbr.rel (%p474) target = $region48
        $region47: #{transformer_block_forward.3} parent=11 // pred_region
          _
        $region48: #{transformer_block_forward.3} parent=11 // pred_fallthru
          _
        // Predicated region
        $region49: #{transformer_block_forward.3} parent=11 // pred_check
          %p477 = pneg %p341
        $region50: #{transformer_block_forward.3} parent=11 // pred_check_branch
          %479 = sbr.rel (%p477) target = $region52
        $region51: #{transformer_block_forward.3} parent=11 // pred_region
          _
        $region52: #{transformer_block_forward.3} parent=11 // pred_fallthru
          _
        // Predicated region
        $region53: #{transformer_block_forward.3} parent=11 // pred_check
          %p480 = pneg %p362
        $region54: #{transformer_block_forward.3} parent=11 // pred_check_branch
          %482 = sbr.rel (%p480) target = $region56
        $region55: #{transformer_block_forward.3} parent=11 // pred_region
          _
        $region56: #{transformer_block_forward.3} parent=11 // pred_fallthru
          _
        // Predicated region
        $region57: #{transformer_block_forward.3} parent=11 // pred_check
          %p483 = pneg %p383
        $region58: #{transformer_block_forward.3} parent=11 // pred_check_branch
          %485 = sbr.rel (%p483) target = $region60
        $region59: #{transformer_block_forward.3} parent=11 // pred_region
          _
        $region60: #{transformer_block_forward.3} parent=11 // pred_fallthru
          _
      $region12: #{transformer_block_forward.3} parent=5 // pred_fallthru
        _
      %p486 = scmp.lt.s32.totalorder %s27, 2
      // Predicated region
      $region61: #{transformer_block_forward.3} parent=5 // pred_check
        %p487 = pneg %p486
      $region62: #{transformer_block_forward.3} parent=5 // pred_check_branch
        %489 = sbr.rel (%p487) target = $region64
      $region63: #{transformer_block_forward.3} parent=5 // pred_region
        // Predicated region
        $region65: #{transformer_block_forward.3} parent=63 // pred_check
          %p490 = pneg %p47
        $region66: #{transformer_block_forward.3} parent=63 // pred_check_branch
          %492 = sbr.rel (%p490) target = $region68
        $region67: #{transformer_block_forward.3} parent=63 // pred_region
          %s493 = smul.u32 2, %s27
          %p494 = scmp.lt.s32.totalorder %s493, 3
          %s495 = scalar_select %p494, %s493, 3
          %s496 = smul.addr %s495, 4
          %s497 = scalar_lea.vmem %s0, %s496
          %s498 = smul.u32 2, %s27
        $region68: #{transformer_block_forward.3} parent=63 // pred_fallthru
          _
        // Predicated region
        $region69: #{transformer_block_forward.3} parent=63 // pred_check
          %p499 = pneg %p73
        $region70: #{transformer_block_forward.3} parent=63 // pred_check_branch
          %501 = sbr.rel (%p499) target = $region72
        $region71: #{transformer_block_forward.3} parent=63 // pred_region
          %s502 = smul.u32 2, %s27
          %p503 = scmp.lt.s32.totalorder %s502, 3
          %s504 = scalar_select %p503, %s502, 3
          %s505 = smul.addr %s504, 4
          %s506 = scalar_lea.vmem %s1, %s505
          %s507 = smul.u32 2, %s27
        $region72: #{transformer_block_forward.3} parent=63 // pred_fallthru
          _
        // Predicated region
        $region73: #{transformer_block_forward.3} parent=63 // pred_check
          %p508 = pneg %p99
        $region74: #{transformer_block_forward.3} parent=63 // pred_check_branch
          %510 = sbr.rel (%p508) target = $region76
        $region75: #{transformer_block_forward.3} parent=63 // pred_region
          %s511 = smul.u32 2, %s27
          %p512 = scmp.lt.s32.totalorder %s511, 3
          %s513 = scalar_select %p512, %s511, 3
          %s514 = smul.addr %s513, 8
          %s515 = scalar_lea.vmem %s2, %s514
          %s516 = smul.u32 2, %s27
        $region76: #{transformer_block_forward.3} parent=63 // pred_fallthru
          _
        // Predicated region
        $region77: #{transformer_block_forward.3} parent=63 // pred_check
          %p517 = pneg %p125
        $region78: #{transformer_block_forward.3} parent=63 // pred_check_branch
          %519 = sbr.rel (%p517) target = $region80
        $region79: #{transformer_block_forward.3} parent=63 // pred_region
          %s520 = smul.u32 2, %s27
          %p521 = scmp.lt.s32.totalorder %s520, 3
          %s522 = scalar_select %p521, %s520, 3
          %s523 = smul.addr %s522, 8
          %s524 = scalar_lea.vmem %s3, %s523
          %s525 = smul.u32 2, %s27
        $region80: #{transformer_block_forward.3} parent=63 // pred_fallthru
          _
      $region64: #{transformer_block_forward.3} parent=5 // pred_fallthru
        _
      %p526 = scmp.le.s32.totalorder 1, %s27
      %p527 = scmp.lt.s32.totalorder %s27, 3
      %p528 = pnand %p526, %p527
      %p529 = pneg %p528
      // Predicated region
      $region81: #{transformer_block_forward.3} parent=5 // pred_check
        _
      $region82: #{transformer_block_forward.3} parent=5 // pred_check_branch
        %531 = sbr.rel (%p528) target = $region84
      $region83: #{transformer_block_forward.3} parent=5 // pred_region
        %s532 = ssub.s32 %s27, 1
        %s533 = smul.u32 2, %s32
        %p534 = scmp.lt.s32.totalorder %s533, 3
        %s535 = scalar_select %p534, %s533, 3
        %s536 = smul.addr %s535, 4
        %s537 = scalar_lea.vmem %s0, %s536
        %p538 = pneg %p53
        %p539 = pneg %p50
        %s540 = smul.u32 2, %s32
        %p541 = scmp.lt.s32.totalorder %s540, 3
        %s542 = scalar_select %p541, %s540, 3
        %s543 = smul.addr %s542, 4
        %s544 = scalar_lea.vmem %s1, %s543
        %p545 = pneg %p79
        %p546 = pneg %p76
        %s547 = smul.u32 2, %s32
        %p548 = scmp.lt.s32.totalorder %s547, 3
        %s549 = scalar_select %p548, %s547, 3
        %s550 = smul.addr %s549, 8
        %s551 = scalar_lea.vmem %s2, %s550
        %p552 = pneg %p105
        %p553 = pneg %p102
        %s554 = smul.u32 2, %s32
        %p555 = scmp.lt.s32.totalorder %s554, 3
        %s556 = scalar_select %p555, %s554, 3
        %s557 = smul.addr %s556, 8
        %s558 = scalar_lea.vmem %s3, %s557
        %p559 = pneg %p131
        %p560 = pneg %p128
        %p561 = pneg %p152
        %p562 = pneg %p149
        %p563 = pneg %p173
        %p564 = pneg %p170
        %p565 = pneg %p194
        %p566 = pneg %p191
        %p567 = pneg %p215
        %p568 = pneg %p212
        %p569 = pneg %p236
        %p570 = pneg %p233
        %p571 = pneg %p257
        %p572 = pneg %p254
        %p573 = pneg %p278
        %p574 = pneg %p275
        %p575 = pneg %p299
        %p576 = pneg %p296
        %p577 = pneg %p320
        %p578 = pneg %p317
        %p579 = pneg %p341
        %p580 = pneg %p338
        %p581 = pneg %p362
        %p582 = pneg %p359
        %p583 = pneg %p383
        %p584 = pneg %p380
        %p585 = pneg %p409
        %p586 = pneg %p406
        %s587 = sand.u32 %s396, 1
        %s588 = scalar_lea.sflag [#allocation3], %s587
        %s589 = sand.u32 %s396, 1
        %s590 = smul.addr %s589, 16
        %s591 = scalar_lea.vmem [#allocation2], %s590
        %p592 = pneg %p435
        %p593 = pneg %p432
        %s594 = smul.u32 2, %s32
        %p595 = scmp.lt.s32.totalorder %s594, 3
        %s596 = scalar_select %p595, %s594, 3
        %s597 = smul.addr %s596, 8
        %s598 = scalar_lea.vmem %s17, %s597
        %s599 = smul.u32 2, %s32
        %p600 = scmp.lt.s32.totalorder %s599, 3
        %s601 = scalar_select %p600, %s599, 3
        %s602 = smul.addr %s601, 4
        %s603 = scalar_lea.vmem %s0, %s602
        %s604 = smul.u32 2, %s32
        %s605 = smul.u32 2, %s32
        %p606 = scmp.lt.s32.totalorder %s605, 3
        %s607 = scalar_select %p606, %s605, 3
        %s608 = smul.addr %s607, 4
        %s609 = scalar_lea.vmem %s1, %s608
        %s610 = smul.u32 2, %s32
        %s611 = smul.u32 2, %s32
        %p612 = scmp.lt.s32.totalorder %s611, 3
        %s613 = scalar_select %p612, %s611, 3
        %s614 = smul.addr %s613, 8
        %s615 = scalar_lea.vmem %s2, %s614
        %s616 = smul.u32 2, %s32
        %s617 = smul.u32 2, %s32
        %p618 = scmp.lt.s32.totalorder %s617, 3
        %s619 = scalar_select %p618, %s617, 3
        %s620 = smul.addr %s619, 8
        %s621 = scalar_lea.vmem %s3, %s620
        %s622 = smul.u32 2, %s32
        %s623 = smul.u32 2, %s32
        %s624 = smul.u32 2, %s32
        %p625 = scmp.lt.s32.totalorder %s624, 3
        %s626 = scalar_select %p625, %s624, 3
        %s627 = smul.addr %s626, 8
        %s628 = scalar_lea.vmem %s17, %s627
        %s629 = smul.u32 2, %s32
        %v631 = vld [vmem:[%s615] sm:$0xff]
        %v632 = vld [vmem:[%s615 + $0x8] sm:$0xff]
        %v633 = vld [vmem:[%s6] sm:$0xf]
        %v634 = vpack.c.bf16 %v632, %v631
        %v635 = vld [vmem:[%s7] sm:$0x1]
        %v637 = vlaneseq
        %v638 = vshrl.u32 %v637, 7
        %v639 = vsub.s32 0, %v638
        %v640 = vrot.slane %v635, %v639
        %vm642 = vcmask 64512
        %v644 = vsel %vm642, %v634, 0
        %vm646 = vcmask 1043456
        %v648 = vsel %vm646, %v633, 0
        %650 = vmatprep.subr.bf16.mxu0 0
        %651 = vmatpush1.bf16.msra.mxu0 %v648
        %652 = vmatprep.subr.bf16.mxu0 0
        %653 = vmatpush1.bf16.msra.mxu0 0
        %654 = vmatprep.subr.bf16.mxu0 0
        %655 = vmatpush1.bf16.msra.mxu0 0
        %656 = vmatprep.subr.bf16.mxu0 0
        %657 = vmatpush1.bf16.msra.mxu0 0
        %658 = vmatprep.subr.bf16.mxu0 0
        %659 = vmatpush1.bf16.msra.mxu0 0
        %660 = vmatprep.subr.bf16.mxu0 0
        %661 = vmatpush1.bf16.msra.mxu0 0
        %662 = vmatprep.subr.bf16.mxu0 0
        %663 = vmatpush1.bf16.msra.mxu0 0
        %664 = vmatprep.subr.bf16.mxu0 0
        %665 = vmatpush1.bf16.msra.mxu0 0
        %666 = vmatprep.subr.bf16.mxu0 0
        %667 = vmatpush1.bf16.msra.mxu0 0
        %668 = vmatprep.subr.bf16.mxu0 0
        %669 = vmatpush1.bf16.msra.mxu0 0
        %670 = vmatprep.subr.bf16.mxu0 0
        %671 = vmatpush1.bf16.msra.mxu0 0
        %672 = vmatprep.subr.bf16.mxu0 0
        %673 = vmatpush1.bf16.msra.mxu0 0
        %674 = vmatprep.subr.bf16.mxu0 0
        %675 = vmatpush1.bf16.msra.mxu0 0
        %676 = vmatprep.subr.bf16.mxu0 0
        %677 = vmatpush1.bf16.msra.mxu0 0
        %678 = vmatprep.subr.bf16.mxu0 0
        %679 = vmatpush1.bf16.msra.mxu0 0
        %680 = vmatprep.subr.bf16.mxu0 0
        %681 = vmatpush1.bf16.msra.mxu0 0
        %682 = vmatprep.mubr.bf16.mxu0 0
        %683 = vmatmul.mubr.bf16.gmra.mrb[0].mxu0 %v644
        %v684 = vpop.f32.mrb[0].mxu0
        %v685 = vadd.f32 %v640, %v684
        %v686 = vpop.f32.mrb[0].mxu0
        %v687 = vpop.f32.mrb[0].mxu0
        %v688 = vadd.f32 %v640, %v687
        %v689 = vpop.f32.mrb[0].mxu0
        %690 = vdwg.mxu0
        %v691 = vmax.f32 %v685, 0.0
        %v692 = vmax.f32 %v688, 0.0
        %v693 = vld [vmem:[%s8] sm:$0xf]
        %v694 = vld [vmem:[%s8 + $0x4] sm:$0xf]
        %v695 = vld [vmem:[%s8 + $0x8] sm:$0xf]
        %v696 = vld [vmem:[%s8 + $0xc] sm:$0xf]
        %v697 = vld [vmem:[%s8 + $0x10] sm:$0xf]
        %v698 = vld [vmem:[%s8 + $0x14] sm:$0xf]
        %v699 = vld [vmem:[%s8 + $0x18] sm:$0xf]
        %v700 = vld [vmem:[%s8 + $0x1c] sm:$0xf]
        %v701 = vld [vmem:[%s8 + $0x20] sm:$0xf]
        %v702 = vld [vmem:[%s8 + $0x24] sm:$0xf]
        %v703 = vld [vmem:[%s8 + $0x28] sm:$0xf]
        %v704 = vld [vmem:[%s8 + $0x2c] sm:$0xf]
        %v705 = vld [vmem:[%s8 + $0x30] sm:$0xf]
        %v706 = vld [vmem:[%s8 + $0x34] sm:$0xf]
        %v707 = vld [vmem:[%s8 + $0x38] sm:$0xf]
        %v708 = vld [vmem:[%s8 + $0x3c] sm:$0xf]
        %v709 = vpack.c.bf16 %v692, %v691
        %v710 = vld [vmem:[%s9] sm:$0x1]
        %v712 = vlaneseq
        %v713 = vshrl.u32 %v712, 7
        %v714 = vsub.s32 0, %v713
        %v715 = vrot.slane %v710, %v714
        %v733 = vunpack.c.l.b16 %v693
        %v734 = vunpack.c.l.b16 %v694
        %v735 = vunpack.c.l.b16 %v695
        %v736 = vunpack.c.l.b16 %v696
        %v737 = vunpack.c.l.b16 %v697
        %v738 = vunpack.c.l.b16 %v698
        %v739 = vunpack.c.l.b16 %v699
        %v740 = vunpack.c.l.b16 %v700
        %v741 = vunpack.c.l.b16 %v701
        %v742 = vunpack.c.l.b16 %v702
        %v743 = vunpack.c.l.b16 %v703
        %v744 = vunpack.c.l.b16 %v704
        %v745 = vunpack.c.l.b16 %v705
        %v746 = vunpack.c.l.b16 %v706
        %v747 = vunpack.c.l.b16 %v707
        %v748 = vunpack.c.l.b16 %v708
        %v749 = vpack.c.b16 %v734, %v733
        %v750 = vpack.c.b16 %v736, %v735
        %v751 = vpack.c.b16 %v738, %v737
        %v752 = vpack.c.b16 %v740, %v739
        %v753 = vpack.c.b16 %v742, %v741
        %v754 = vpack.c.b16 %v744, %v743
        %v755 = vpack.c.b16 %v746, %v745
        %v756 = vpack.c.b16 %v748, %v747
        %765 = vmatprep.subr.bf16.mxu0 0
        %766 = vmatpush1.bf16.msra.mxu0 %v749
        %767 = vmatprep.subr.bf16.mxu0 0
        %768 = vmatpush1.bf16.msra.mxu0 %v750
        %769 = vmatprep.subr.bf16.mxu0 0
        %770 = vmatpush1.bf16.msra.mxu0 %v751
        %771 = vmatprep.subr.bf16.mxu0 0
        %772 = vmatpush1.bf16.msra.mxu0 %v752
        %773 = vmatprep.subr.bf16.mxu0 0
        %774 = vmatpush1.bf16.msra.mxu0 %v753
        %775 = vmatprep.subr.bf16.mxu0 0
        %776 = vmatpush1.bf16.msra.mxu0 %v754
        %777 = vmatprep.subr.bf16.mxu0 0
        %778 = vmatpush1.bf16.msra.mxu0 %v755
        %779 = vmatprep.subr.bf16.mxu0 0
        %780 = vmatpush1.bf16.msra.mxu0 %v756
        %781 = vmatprep.subr.bf16.mxu0 0
        %782 = vmatpush1.bf16.msra.mxu0 0
        %783 = vmatprep.subr.bf16.mxu0 0
        %784 = vmatpush1.bf16.msra.mxu0 0
        %785 = vmatprep.subr.bf16.mxu0 0
        %786 = vmatpush1.bf16.msra.mxu0 0
        %787 = vmatprep.subr.bf16.mxu0 0
        %788 = vmatpush1.bf16.msra.mxu0 0
        %789 = vmatprep.subr.bf16.mxu0 0
        %790 = vmatpush1.bf16.msra.mxu0 0
        %791 = vmatprep.subr.bf16.mxu0 0
        %792 = vmatpush1.bf16.msra.mxu0 0
        %793 = vmatprep.subr.bf16.mxu0 0
        %794 = vmatpush1.bf16.msra.mxu0 0
        %795 = vmatprep.subr.bf16.mxu0 0
        %796 = vmatpush1.bf16.msra.mxu0 0
        %797 = vmatprep.mubr.bf16.mxu0 0
        %798 = vmatmul.mubr.bf16.gmra.mrb[0].mxu0 %v709
        %v799 = vpop.f32.mrb[0].mxu0
        %v800 = vadd.f32 %v715, %v799
        %v801 = vpop.f32.mrb[0].mxu0
        %v802 = vpop.f32.mrb[0].mxu0
        %v803 = vadd.f32 %v715, %v802
        %v804 = vpop.f32.mrb[0].mxu0
        %805 = vdwg.mxu0
        %v806 = vld [vmem:[%s621] sm:$0xff]
        %v807 = vld [vmem:[%s621 + $0x8] sm:$0xff]
        %v808 = vld [vmem:[%s4] sm:$0xf]
        %v809 = vld [vmem:[%s4 + $0x4] sm:$0xf]
        %v810 = vld [vmem:[%s4 + $0x8] sm:$0xf]
        %v811 = vld [vmem:[%s4 + $0xc] sm:$0xf]
        %v812 = vpack.c.bf16 %v807, %v806
        %v813 = vld [vmem:[%s5] sm:$0x1]
        %v815 = vlaneseq
        %v816 = vshrl.u32 %v815, 7
        %v817 = vsub.s32 0, %v816
        %v818 = vrot.slane %v813, %v817
        %v824 = vunpack.c.l.b16 %v808
        %v825 = vunpack.c.l.b16 %v809
        %v826 = vunpack.c.l.b16 %v810
        %v827 = vunpack.c.l.b16 %v811
        %v828 = vpack.c.b16 %v825, %v824
        %v829 = vpack.c.b16 %v827, %v826
        %vm832 = vcmask 261120
        %v834 = vsel %vm832, %v812, 0
        %836 = vmatprep.subr.bf16.mxu0 0
        %837 = vmatpush1.bf16.msra.mxu0 %v828
        %838 = vmatprep.subr.bf16.mxu0 0
        %839 = vmatpush1.bf16.msra.mxu0 %v829
        %840 = vmatprep.subr.bf16.mxu0 0
        %841 = vmatpush1.bf16.msra.mxu0 0
        %842 = vmatprep.subr.bf16.mxu0 0
        %843 = vmatpush1.bf16.msra.mxu0 0
        %844 = vmatprep.subr.bf16.mxu0 0
        %845 = vmatpush1.bf16.msra.mxu0 0
        %846 = vmatprep.subr.bf16.mxu0 0
        %847 = vmatpush1.bf16.msra.mxu0 0
        %848 = vmatprep.subr.bf16.mxu0 0
        %849 = vmatpush1.bf16.msra.mxu0 0
        %850 = vmatprep.subr.bf16.mxu0 0
        %851 = vmatpush1.bf16.msra.mxu0 0
        %852 = vmatprep.subr.bf16.mxu0 0
        %853 = vmatpush1.bf16.msra.mxu0 0
        %854 = vmatprep.subr.bf16.mxu0 0
        %855 = vmatpush1.bf16.msra.mxu0 0
        %856 = vmatprep.subr.bf16.mxu0 0
        %857 = vmatpush1.bf16.msra.mxu0 0
        %858 = vmatprep.subr.bf16.mxu0 0
        %859 = vmatpush1.bf16.msra.mxu0 0
        %860 = vmatprep.subr.bf16.mxu0 0
        %861 = vmatpush1.bf16.msra.mxu0 0
        %862 = vmatprep.subr.bf16.mxu0 0
        %863 = vmatpush1.bf16.msra.mxu0 0
        %864 = vmatprep.subr.bf16.mxu0 0
        %865 = vmatpush1.bf16.msra.mxu0 0
        %866 = vmatprep.subr.bf16.mxu0 0
        %867 = vmatpush1.bf16.msra.mxu0 0
        %868 = vmatprep.mubr.bf16.mxu0 0
        %869 = vmatmul.mubr.bf16.gmra.mrb[0].mxu0 %v834
        %v870 = vpop.f32.mrb[0].mxu0
        %v871 = vadd.f32 %v818, %v870
        %v872 = vpop.f32.mrb[0].mxu0
        %v873 = vpop.f32.mrb[0].mxu0
        %v874 = vadd.f32 %v818, %v873
        %v875 = vpop.f32.mrb[0].mxu0
        %876 = vdwg.mxu0
        %v877 = vld [vmem:[%s603] sm:$0xf]
        %v878 = vld [vmem:[%s603 + $0x4] sm:$0xf]
        %v879 = vunpack.c.l.bf16 %v877
        %v880 = vunpack.c.l.bf16 %v878
        %v881 = vsub.f32 %v871, %v879
        %v882 = vsub.f32 %v874, %v880
        %v883 = vadd.f32 %v881, %v800
        %v884 = vadd.f32 %v882, %v803
        %v885 = vld [vmem:[%s10] sm:$0xf]
        %v886 = vld [vmem:[%s10 + $0x4] sm:$0xf]
        %v887 = vld [vmem:[%s10 + $0x8] sm:$0xf]
        %v888 = vld [vmem:[%s10 + $0xc] sm:$0xf]
        %v889 = vld [vmem:[%s10 + $0x10] sm:$0xf]
        %v890 = vld [vmem:[%s10 + $0x14] sm:$0xf]
        %v891 = vld [vmem:[%s10 + $0x18] sm:$0xf]
        %v892 = vld [vmem:[%s10 + $0x1c] sm:$0xf]
        %v893 = vld [vmem:[%s10 + $0x20] sm:$0xf]
        %v894 = vld [vmem:[%s10 + $0x24] sm:$0xf]
        %v895 = vld [vmem:[%s10 + $0x28] sm:$0xf]
        %v896 = vld [vmem:[%s10 + $0x2c] sm:$0xf]
        %v897 = vld [vmem:[%s10 + $0x30] sm:$0xf]
        %v898 = vld [vmem:[%s10 + $0x34] sm:$0xf]
        %v899 = vld [vmem:[%s10 + $0x38] sm:$0xf]
        %v900 = vld [vmem:[%s10 + $0x3c] sm:$0xf]
        %v901 = vpack.c.bf16 %v884, %v883
        %v902 = vld [vmem:[%s11] sm:$0x1]
        %v904 = vlaneseq
        %v905 = vshrl.u32 %v904, 7
        %v906 = vsub.s32 0, %v905
        %v907 = vrot.slane %v902, %v906
        %v925 = vunpack.c.l.b16 %v885
        %v926 = vunpack.c.l.b16 %v886
        %v927 = vunpack.c.l.b16 %v887
        %v928 = vunpack.c.l.b16 %v888
        %v929 = vunpack.c.l.b16 %v889
        %v930 = vunpack.c.l.b16 %v890
        %v931 = vunpack.c.l.b16 %v891
        %v932 = vunpack.c.l.b16 %v892
        %v933 = vunpack.c.l.b16 %v893
        %v934 = vunpack.c.l.b16 %v894
        %v935 = vunpack.c.l.b16 %v895
        %v936 = vunpack.c.l.b16 %v896
        %v937 = vunpack.c.l.b16 %v897
        %v938 = vunpack.c.l.b16 %v898
        %v939 = vunpack.c.l.b16 %v899
        %v940 = vunpack.c.l.b16 %v900
        %v941 = vpack.c.b16 %v926, %v925
        %v942 = vpack.c.b16 %v928, %v927
        %v943 = vpack.c.b16 %v930, %v929
        %v944 = vpack.c.b16 %v932, %v931
        %v945 = vpack.c.b16 %v934, %v933
        %v946 = vpack.c.b16 %v936, %v935
        %v947 = vpack.c.b16 %v938, %v937
        %v948 = vpack.c.b16 %v940, %v939
        %957 = vmatprep.subr.bf16.mxu0 0
        %958 = vmatpush1.bf16.msra.mxu0 %v941
        %959 = vmatprep.subr.bf16.mxu0 0
        %960 = vmatpush1.bf16.msra.mxu0 %v942
        %961 = vmatprep.subr.bf16.mxu0 0
        %962 = vmatpush1.bf16.msra.mxu0 %v943
        %963 = vmatprep.subr.bf16.mxu0 0
        %964 = vmatpush1.bf16.msra.mxu0 %v944
        %965 = vmatprep.subr.bf16.mxu0 0
        %966 = vmatpush1.bf16.msra.mxu0 %v945
        %967 = vmatprep.subr.bf16.mxu0 0
        %968 = vmatpush1.bf16.msra.mxu0 %v946
        %969 = vmatprep.subr.bf16.mxu0 0
        %970 = vmatpush1.bf16.msra.mxu0 %v947
        %971 = vmatprep.subr.bf16.mxu0 0
        %972 = vmatpush1.bf16.msra.mxu0 %v948
        %973 = vmatprep.subr.bf16.mxu0 0
        %974 = vmatpush1.bf16.msra.mxu0 0
        %975 = vmatprep.subr.bf16.mxu0 0
        %976 = vmatpush1.bf16.msra.mxu0 0
        %977 = vmatprep.subr.bf16.mxu0 0
        %978 = vmatpush1.bf16.msra.mxu0 0
        %979 = vmatprep.subr.bf16.mxu0 0
        %980 = vmatpush1.bf16.msra.mxu0 0
        %981 = vmatprep.subr.bf16.mxu0 0
        %982 = vmatpush1.bf16.msra.mxu0 0
        %983 = vmatprep.subr.bf16.mxu0 0
        %984 = vmatpush1.bf16.msra.mxu0 0
        %985 = vmatprep.subr.bf16.mxu0 0
        %986 = vmatpush1.bf16.msra.mxu0 0
        %987 = vmatprep.subr.bf16.mxu0 0
        %988 = vmatpush1.bf16.msra.mxu0 0
        %989 = vmatprep.mubr.bf16.mxu0 0
        %990 = vmatmul.mubr.bf16.gmra.mrb[0].mxu0 %v901
        %v991 = vpop.f32.mrb[0].mxu0
        %v992 = vadd.f32 %v907, %v991
        %v993 = vpop.f32.mrb[0].mxu0
        %v994 = vpop.f32.mrb[0].mxu0
        %v995 = vadd.f32 %v907, %v994
        %v996 = vpop.f32.mrb[0].mxu0
        %997 = vdwg.mxu0
        %v998 = vmax.f32 %v992, 0.0
        %v999 = vmax.f32 %v995, 0.0
        %v1000 = vld [vmem:[%s12] sm:$0xf]
        %v1001 = vld [vmem:[%s12 + $0x4] sm:$0xf]
        %v1002 = vld [vmem:[%s12 + $0x8] sm:$0xf]
        %v1003 = vld [vmem:[%s12 + $0xc] sm:$0xf]
        %v1004 = vld [vmem:[%s12 + $0x10] sm:$0xf]
        %v1005 = vld [vmem:[%s12 + $0x14] sm:$0xf]
        %v1006 = vld [vmem:[%s12 + $0x18] sm:$0xf]
        %v1007 = vld [vmem:[%s12 + $0x1c] sm:$0xf]
        %v1008 = vld [vmem:[%s12 + $0x20] sm:$0xf]
        %v1009 = vld [vmem:[%s12 + $0x24] sm:$0xf]
        %v1010 = vld [vmem:[%s12 + $0x28] sm:$0xf]
        %v1011 = vld [vmem:[%s12 + $0x2c] sm:$0xf]
        %v1012 = vld [vmem:[%s12 + $0x30] sm:$0xf]
        %v1013 = vld [vmem:[%s12 + $0x34] sm:$0xf]
        %v1014 = vld [vmem:[%s12 + $0x38] sm:$0xf]
        %v1015 = vld [vmem:[%s12 + $0x3c] sm:$0xf]
        %v1016 = vpack.c.bf16 %v999, %v998
        %v1017 = vld [vmem:[%s13] sm:$0x1]
        %v1019 = vlaneseq
        %v1020 = vshrl.u32 %v1019, 7
        %v1021 = vsub.s32 0, %v1020
        %v1022 = vrot.slane %v1017, %v1021
        %v1040 = vunpack.c.l.b16 %v1000
        %v1041 = vunpack.c.l.b16 %v1001
        %v1042 = vunpack.c.l.b16 %v1002
        %v1043 = vunpack.c.l.b16 %v1003
        %v1044 = vunpack.c.l.b16 %v1004
        %v1045 = vunpack.c.l.b16 %v1005
        %v1046 = vunpack.c.l.b16 %v1006
        %v1047 = vunpack.c.l.b16 %v1007
        %v1048 = vunpack.c.l.b16 %v1008
        %v1049 = vunpack.c.l.b16 %v1009
        %v1050 = vunpack.c.l.b16 %v1010
        %v1051 = vunpack.c.l.b16 %v1011
        %v1052 = vunpack.c.l.b16 %v1012
        %v1053 = vunpack.c.l.b16 %v1013
        %v1054 = vunpack.c.l.b16 %v1014
        %v1055 = vunpack.c.l.b16 %v1015
        %v1056 = vpack.c.b16 %v1041, %v1040
        %v1057 = vpack.c.b16 %v1043, %v1042
        %v1058 = vpack.c.b16 %v1045, %v1044
        %v1059 = vpack.c.b16 %v1047, %v1046
        %v1060 = vpack.c.b16 %v1049, %v1048
        %v1061 = vpack.c.b16 %v1051, %v1050
        %v1062 = vpack.c.b16 %v1053, %v1052
        %v1063 = vpack.c.b16 %v1055, %v1054
        %1072 = vmatprep.subr.bf16.mxu0 0
        %1073 = vmatpush1.bf16.msra.mxu0 %v1056
        %1074 = vmatprep.subr.bf16.mxu0 0
        %1075 = vmatpush1.bf16.msra.mxu0 %v1057
        %1076 = vmatprep.subr.bf16.mxu0 0
        %1077 = vmatpush1.bf16.msra.mxu0 %v1058
        %1078 = vmatprep.subr.bf16.mxu0 0
        %1079 = vmatpush1.bf16.msra.mxu0 %v1059
        %1080 = vmatprep.subr.bf16.mxu0 0
        %1081 = vmatpush1.bf16.msra.mxu0 %v1060
        %1082 = vmatprep.subr.bf16.mxu0 0
        %1083 = vmatpush1.bf16.msra.mxu0 %v1061
        %1084 = vmatprep.subr.bf16.mxu0 0
        %1085 = vmatpush1.bf16.msra.mxu0 %v1062
        %1086 = vmatprep.subr.bf16.mxu0 0
        %1087 = vmatpush1.bf16.msra.mxu0 %v1063
        %1088 = vmatprep.subr.bf16.mxu0 0
        %1089 = vmatpush1.bf16.msra.mxu0 0
        %1090 = vmatprep.subr.bf16.mxu0 0
        %1091 = vmatpush1.bf16.msra.mxu0 0
        %1092 = vmatprep.subr.bf16.mxu0 0
        %1093 = vmatpush1.bf16.msra.mxu0 0
        %1094 = vmatprep.subr.bf16.mxu0 0
        %1095 = vmatpush1.bf16.msra.mxu0 0
        %1096 = vmatprep.subr.bf16.mxu0 0
        %1097 = vmatpush1.bf16.msra.mxu0 0
        %1098 = vmatprep.subr.bf16.mxu0 0
        %1099 = vmatpush1.bf16.msra.mxu0 0
        %1100 = vmatprep.subr.bf16.mxu0 0
        %1101 = vmatpush1.bf16.msra.mxu0 0
        %1102 = vmatprep.subr.bf16.mxu0 0
        %1103 = vmatpush1.bf16.msra.mxu0 0
        %1104 = vmatprep.mubr.bf16.mxu0 0
        %1105 = vmatmul.mubr.bf16.gmra.mrb[0].mxu0 %v1016
        %v1106 = vpop.f32.mrb[0].mxu0
        %v1107 = vadd.f32 %v1022, %v1106
        %v1108 = vpop.f32.mrb[0].mxu0
        %v1109 = vpop.f32.mrb[0].mxu0
        %v1110 = vadd.f32 %v1022, %v1109
        %v1111 = vpop.f32.mrb[0].mxu0
        %1112 = vdwg.mxu0
        %1113 = vrot.lane.b32.xlu0 %v1107, 32
        %v1114 = vpop.permute.xlu0 %1113
        %1115 = vrot.lane.b32.xlu0 %v1110, 32
        %v1116 = vpop.permute.xlu0 %1115
        %v1117 = vmax.f32 %v1107, %v1114
        %v1118 = vmax.f32 %v1110, %v1116
        %1119 = vrot.lane.b32.xlu0 %v1117, 64
        %v1120 = vpop.permute.xlu0 %1119
        %1121 = vrot.lane.b32.xlu0 %v1118, 64
        %v1122 = vpop.permute.xlu0 %1121
        %v1123 = vmax.f32 %v1117, %v1120
        %v1124 = vmax.f32 %v1118, %v1122
        %v1125 = vsub.f32 %v1107, %v1123
        %v1126 = vsub.f32 %v1110, %v1124
        %v1127 = vmul.f32 %v1125, 1.442695
        %v1128 = vpow.pop %v1127
        %v1129 = vmul.f32 %v1126, 1.442695
        %v1130 = vpow.pop %v1129
        %1131 = vrot.lane.b32.xlu0 %v1128, 32
        %v1132 = vpop.permute.xlu0 %1131
        %1133 = vrot.lane.b32.xlu0 %v1130, 32
        %v1134 = vpop.permute.xlu0 %1133
        %v1135 = vadd.f32 %v1128, %v1132
        %v1136 = vadd.f32 %v1130, %v1134
        %1137 = vrot.lane.b32.xlu0 %v1135, 64
        %v1138 = vpop.permute.xlu0 %1137
        %1139 = vrot.lane.b32.xlu0 %v1136, 64
        %v1140 = vpop.permute.xlu0 %1139
        %v1141 = vadd.f32 %v1135, %v1138
        %v1142 = vadd.f32 %v1136, %v1140
        %v1143 = vrcp.pop %v1141
        %v1144 = vmul.f32 %v1128, %v1143
        %v1145 = vrcp.pop %v1142
        %v1146 = vmul.f32 %v1130, %v1145
        %v1147 = vld [vmem:[%s609] sm:$0xf]
        %v1148 = vld [vmem:[%s609 + $0x4] sm:$0xf]
        %v1149 = vunpack.c.l.bf16 %v1147
        %v1150 = vunpack.c.l.bf16 %v1148
        %v1151 = vadd.f32 %v1149, %v800
        %v1152 = vadd.f32 %v1150, %v803
        %v1153 = vmul.f32 %v1144, %v1151
        %v1154 = vmul.f32 %v1146, %v1152
        %v1155 = vld [vmem:[%s14] sm:$0xf]
        %v1156 = vld [vmem:[%s14 + $0x4] sm:$0xf]
        %v1157 = vld [vmem:[%s14 + $0x8] sm:$0xf]
        %v1158 = vld [vmem:[%s14 + $0xc] sm:$0xf]
        %v1159 = vld [vmem:[%s14 + $0x10] sm:$0xf]
        %v1160 = vld [vmem:[%s14 + $0x14] sm:$0xf]
        %v1161 = vld [vmem:[%s14 + $0x18] sm:$0xf]
        %v1162 = vld [vmem:[%s14 + $0x1c] sm:$0xf]
        %v1163 = vld [vmem:[%s14 + $0x20] sm:$0xf]
        %v1164 = vld [vmem:[%s14 + $0x24] sm:$0xf]
        %v1165 = vld [vmem:[%s14 + $0x28] sm:$0xf]
        %v1166 = vld [vmem:[%s14 + $0x2c] sm:$0xf]
        %v1167 = vld [vmem:[%s14 + $0x30] sm:$0xf]
        %v1168 = vld [vmem:[%s14 + $0x34] sm:$0xf]
        %v1169 = vld [vmem:[%s14 + $0x38] sm:$0xf]
        %v1170 = vld [vmem:[%s14 + $0x3c] sm:$0xf]
        %v1171 = vpack.c.bf16 %v1154, %v1153
        %v1172 = vld [vmem:[%s15] sm:$0x1]
        %v1174 = vlaneseq
        %v1175 = vshrl.u32 %v1174, 7
        %v1176 = vsub.s32 0, %v1175
        %v1177 = vrot.slane %v1172, %v1176
        %v1195 = vunpack.c.l.b16 %v1155
        %v1196 = vunpack.c.l.b16 %v1156
        %v1197 = vunpack.c.l.b16 %v1157
        %v1198 = vunpack.c.l.b16 %v1158
        %v1199 = vunpack.c.l.b16 %v1159
        %v1200 = vunpack.c.l.b16 %v1160
        %v1201 = vunpack.c.l.b16 %v1161
        %v1202 = vunpack.c.l.b16 %v1162
        %v1203 = vunpack.c.l.b16 %v1163
        %v1204 = vunpack.c.l.b16 %v1164
        %v1205 = vunpack.c.l.b16 %v1165
        %v1206 = vunpack.c.l.b16 %v1166
        %v1207 = vunpack.c.l.b16 %v1167
        %v1208 = vunpack.c.l.b16 %v1168
        %v1209 = vunpack.c.l.b16 %v1169
        %v1210 = vunpack.c.l.b16 %v1170
        %v1211 = vpack.c.b16 %v1196, %v1195
        %v1212 = vpack.c.b16 %v1198, %v1197
        %v1213 = vpack.c.b16 %v1200, %v1199
        %v1214 = vpack.c.b16 %v1202, %v1201
        %v1215 = vpack.c.b16 %v1204, %v1203
        %v1216 = vpack.c.b16 %v1206, %v1205
        %v1217 = vpack.c.b16 %v1208, %v1207
        %v1218 = vpack.c.b16 %v1210, %v1209
        %1227 = vmatprep.subr.bf16.mxu0 0
        %1228 = vmatpush1.bf16.msra.mxu0 %v1211
        %1229 = vmatprep.subr.bf16.mxu0 0
        %1230 = vmatpush1.bf16.msra.mxu0 %v1212
        %1231 = vmatprep.subr.bf16.mxu0 0
        %1232 = vmatpush1.bf16.msra.mxu0 %v1213
        %1233 = vmatprep.subr.bf16.mxu0 0
        %1234 = vmatpush1.bf16.msra.mxu0 %v1214
        %1235 = vmatprep.subr.bf16.mxu0 0
        %1236 = vmatpush1.bf16.msra.mxu0 %v1215
        %1237 = vmatprep.subr.bf16.mxu0 0
        %1238 = vmatpush1.bf16.msra.mxu0 %v1216
        %1239 = vmatprep.subr.bf16.mxu0 0
        %1240 = vmatpush1.bf16.msra.mxu0 %v1217
        %1241 = vmatprep.subr.bf16.mxu0 0
        %1242 = vmatpush1.bf16.msra.mxu0 %v1218
        %1243 = vmatprep.subr.bf16.mxu0 0
        %1244 = vmatpush1.bf16.msra.mxu0 0
        %1245 = vmatprep.subr.bf16.mxu0 0
        %1246 = vmatpush1.bf16.msra.mxu0 0
        %1247 = vmatprep.subr.bf16.mxu0 0
        %1248 = vmatpush1.bf16.msra.mxu0 0
        %1249 = vmatprep.subr.bf16.mxu0 0
        %1250 = vmatpush1.bf16.msra.mxu0 0
        %1251 = vmatprep.subr.bf16.mxu0 0
        %1252 = vmatpush1.bf16.msra.mxu0 0
        %1253 = vmatprep.subr.bf16.mxu0 0
        %1254 = vmatpush1.bf16.msra.mxu0 0
        %1255 = vmatprep.subr.bf16.mxu0 0
        %1256 = vmatpush1.bf16.msra.mxu0 0
        %1257 = vmatprep.subr.bf16.mxu0 0
        %1258 = vmatpush1.bf16.msra.mxu0 0
        %1259 = vmatprep.mubr.bf16.mxu0 0
        %1260 = vmatmul.mubr.bf16.gmra.mrb[0].mxu0 %v1171
        %v1261 = vpop.f32.mrb[0].mxu0
        %v1262 = vadd.f32 %v1177, %v1261
        %v1263 = vpop.f32.mrb[0].mxu0
        %v1264 = vpop.f32.mrb[0].mxu0
        %v1265 = vadd.f32 %v1177, %v1264
        %v1266 = vpop.f32.mrb[0].mxu0
        %1267 = vdwg.mxu0
        %v1268 = vadd.f32 %v1262, %v806
        %v1269 = vadd.f32 %v1265, %v807
        %1270 = vst.msk [vmem:[%s591] sm:$0xff] %vm832, %v1268
        %1271 = vst.msk [vmem:[%s591 + $0x8] sm:$0xff] %vm832, %v1269
        %1272 = vst [vmem:[%s628] sm:$0xff] %v1144
        %1273 = vst [vmem:[%s628 + $0x8] sm:$0xff] %v1146
        %s1274 = sand.u32 %s396, 1
        %s1275 = scalar_lea.sflag [#allocation3], %s1274
        %s1276 = sand.u32 %s396, 1
        %s1277 = smul.addr %s1276, 16
        %s1278 = scalar_lea.vmem [#allocation2], %s1277
        %s1279 = smul.u32 2, %s32
        %p1280 = scmp.lt.s32.totalorder %s1279, 3
        %s1281 = scalar_select %p1280, %s1279, 3
        %s1282 = smul.addr %s1281, 8
        %s1283 = scalar_lea.vmem %s17, %s1282
        // Predicated region
        $region85: #{transformer_block_forward.3} parent=83 // pred_check
          %p1284 = pneg %p406
        $region86: #{transformer_block_forward.3} parent=83 // pred_check_branch
          %1286 = sbr.rel (%p1284) target = $region88
        $region87: #{transformer_block_forward.3} parent=83 // pred_region
          %s1287 = smul.u32 2, %s32
          %s1289 = ssub.s32 256, 256
          %1290 = vsyncadd %s1275, %s1289
          %s1291 = smul.addr %s1287, 128
          %s1292 = scalar_lea.hbm %s16, %s1291
          %s1293 = sshll.u32 %s1278, 4
          %s1294 = int_to_ptr.vmem [resolvable:$true] %s1293
          %1299 = dma.vmem_to_hbm [thread:$0]  %s1294, 256, %s1292, %s1275, 128, 128, 8
        $region88: #{transformer_block_forward.3} parent=83 // pred_fallthru
          _
        // Predicated region
        $region89: #{transformer_block_forward.3} parent=83 // pred_check
          %p1300 = pneg %p432
        $region90: #{transformer_block_forward.3} parent=83 // pred_check_branch
          %1302 = sbr.rel (%p1300) target = $region92
        $region91: #{transformer_block_forward.3} parent=83 // pred_region
          %s1303 = smul.u32 2, %s32
        $region92: #{transformer_block_forward.3} parent=83 // pred_fallthru
          _
      $region84: #{transformer_block_forward.3} parent=5 // pred_fallthru
        _
      %p1304 = scmp.le.s32.totalorder 2, %s27
      // Predicated region
      $region93: #{transformer_block_forward.3} parent=5 // pred_check
        %p1305 = pneg %p1304
      $region94: #{transformer_block_forward.3} parent=5 // pred_check_branch
        %1307 = sbr.rel (%p1305) target = $region96
      $region95: #{transformer_block_forward.3} parent=5 // pred_region
        %s1308 = ssub.s32 %s27, 2
        // Predicated region
        $region97: #{transformer_block_forward.3} parent=95 // pred_check
          %p1309 = pneg %p412
        $region98: #{transformer_block_forward.3} parent=95 // pred_check_branch
          %1311 = sbr.rel (%p1309) target = $region100
        $region99: #{transformer_block_forward.3} parent=95 // pred_region
          %s1312 = sand.u32 %s397, 1
          %s1313 = scalar_lea.sflag [#allocation3], %s1312
          %s1314 = sand.u32 %s397, 1
          %s1315 = smul.addr %s1314, 16
          %s1316 = scalar_lea.vmem [#allocation2], %s1315
          %1317 = dma.done %s1313, 256
        $region100: #{transformer_block_forward.3} parent=95 // pred_fallthru
          _
        // Predicated region
        $region101: #{transformer_block_forward.3} parent=95 // pred_check
          %p1318 = pneg %p438
        $region102: #{transformer_block_forward.3} parent=95 // pred_check_branch
          %1320 = sbr.rel (%p1318) target = $region104
        $region103: #{transformer_block_forward.3} parent=95 // pred_region
          %s1321 = smul.u32 2, %s33
          %p1322 = scmp.lt.s32.totalorder %s1321, 3
          %s1323 = scalar_select %p1322, %s1321, 3
          %s1324 = smul.addr %s1323, 8
          %s1325 = scalar_lea.vmem %s17, %s1324
        $region104: #{transformer_block_forward.3} parent=95 // pred_fallthru
          _
      $region96: #{transformer_block_forward.3} parent=5 // pred_fallthru
        _
    $region6: #{transformer_block_forward.3} parent=1 // loop_footer
      %s31 = sadd.s32 1, %s27
    $region7: #{transformer_block_forward.3} parent=1 // loop_footer_branch
      %26 = sbr.rel target = $region3
    $region8: #{transformer_block_forward.3} parent=1 // loop_exit
      _
    %1326 = vsyncpa [#allocation3], 1
    %s1327 = scalar_lea.sflag [#allocation3], 1
    %1328 = vsyncpa %s1327, 1

</llo_original>
